<compile_context>
chip_gen: v6e
topology: v6e:2x2x1
jax: 0.10.0
libtpu: 0.0.40
codegen_flags: <defaults>
</compile_context>

<pallas_src>
import jax
import jax.numpy as jnp
from jax.experimental import pallas as pl
from jax.experimental.pallas import tpu as pltpu

# ----------------------------- settings ------------------------------------
NUM_LABELS = 4
VAR_HIDDEN = 32
BN_EPS = 1e-5

H1 = VAR_HIDDEN // 2      # 16
H2 = VAR_HIDDEN           # 32

# ------------------------ packed-parameter layout ---------------------------
# One lane-dense (32, 128) f32 slab.  name -> (row, col, nrows, ncols)
SLAB_ROWS = 32
SLAB_COLS = 128

LAYOUT = {
    # weights
    "d0wz": (0,  0,  H2, H2),          # (32, 32) decoder L0, z block
    "e1w":  (0,  32, H1, H2),          # (16, 32) encoder L1
    "d0wy": (16, 32, NUM_LABELS, H2),  # ( 4, 32) decoder L0, y_target block
    "d1w":  (0,  64, H2, H1),          # (32, 16) decoder L1
    "e0wx": (0,  80, 1,  H1),          # ( 1, 16) encoder L0, X column
    "e0wy": (8,  80, NUM_LABELS, H1),  # ( 4, 16) encoder L0, y_train block
    "fw":   (0,  96, H1, 1),           # (16,  1) final Linear(16,1)
    # BN gamma/beta vectors + final bias
    "e1g":  (24, 32, 1, H2),
    "e1b":  (25, 32, 1, H2),
    "d0g":  (26, 32, 1, H2),
    "d0b":  (27, 32, 1, H2),
    "e0g":  (16, 80, 1, H1),
    "e0b":  (17, 80, 1, H1),
    "d1g":  (18, 80, 1, H1),
    "d1b":  (19, 80, 1, H1),
    "fb":   (16, 96, 1, 1),
}


def _blk(ref, name):
    r, c, nr, nc = LAYOUT[name]
    return ref[r:r + nr, c:c + nc]


# ----------------------------- kernel ---------------------------------------
def _bn_relu(h, gamma, beta, n_inv):
    # Training-mode BatchNorm1d.  Batch stats via axis-0 reductions (VPU/XLU,
    # keeps the MXU chain to the 5 layer matmuls), shifted variance for
    # numerical stability.
    mean = jnp.sum(h, axis=0, keepdims=True) * n_inv          # (1, F)
    hc = h - mean
    var = jnp.sum(hc * hc, axis=0, keepdims=True) * n_inv     # (1, F)
    y = hc * jax.lax.rsqrt(var + BN_EPS)
    return jnp.maximum(y * gamma + beta, 0.0)


def cvnp_kernel(x_ref, ytr_ref, ytg_ref, w_ref, out_ref):
    N = x_ref.shape[0]
    n_inv = jnp.float32(1.0 / N)

    x = x_ref[...]        # (N, 1)
    ytr = ytr_ref[...]    # (N, L)
    ytg = ytg_ref[...]    # (N, L)

    # ---- static slices of the packed parameter slab ----
    e0wx = _blk(w_ref, "e0wx")
    e0wy = _blk(w_ref, "e0wy")
    e1w = _blk(w_ref, "e1w")
    d0wz = _blk(w_ref, "d0wz")
    d0wy = _blk(w_ref, "d0wy")
    d1w = _blk(w_ref, "d1w")
    fw = _blk(w_ref, "fw")

    e0g, e0b = _blk(w_ref, "e0g"), _blk(w_ref, "e0b")
    e1g, e1b = _blk(w_ref, "e1g"), _blk(w_ref, "e1b")
    d0g, d0b = _blk(w_ref, "d0g"), _blk(w_ref, "d0b")
    d1g, d1b = _blk(w_ref, "d1g"), _blk(w_ref, "d1b")
    fb = _blk(w_ref, "fb")

    # ---- encoder ----
    # cat(X, y_train) @ W0 == X * W0[0:1, :] + y_train @ W0[1:, :]
    # (pre-BN linear biases dropped: they cancel in batch-mean subtraction)
    h = x * e0wx + jnp.dot(ytr, e0wy, preferred_element_type=jnp.float32)  # (N,16)
    h = _bn_relu(h, e0g, e0b, n_inv)
    h = jnp.dot(h, e1w, preferred_element_type=jnp.float32)                # (N,32)
    z = _bn_relu(h, e1g, e1b, n_inv)

    # ---- decoder ----
    # cat(z, y_target) @ W0 == z @ W0[:32, :] + y_target @ W0[32:, :]
    d = (jnp.dot(z, d0wz, preferred_element_type=jnp.float32)
         + jnp.dot(ytg, d0wy, preferred_element_type=jnp.float32))         # (N,32)
    d = _bn_relu(d, d0g, d0b, n_inv)
    d = jnp.dot(d, d1w, preferred_element_type=jnp.float32)                # (N,16)
    d = _bn_relu(d, d1g, d1b, n_inv)

    # final Linear(16, 1)
    # TODO(synk): lane-dense output packing only matters for the large-N grid
    # version; at N=64 the (N,1) masked store is 256 B and irrelevant.
    out_ref[...] = jnp.dot(d, fw, preferred_element_type=jnp.float32) + fb


# ----------------------------- params ---------------------------------------
def init_params(key):
    """PyTorch-style init: Linear W,b ~ U(-1/sqrt(fan_in), +), BN gamma=1, beta=0.
    Linear weights stored transposed as (in, out). Pre-BN linear biases kept only
    for the pure-JAX reference (the kernel provably doesn't need them)."""
    p = {}

    def linear(k, fi, fo):
        kw, kb = jax.random.split(k)
        bound = 1.0 / jnp.sqrt(fi)
        w = jax.random.uniform(kw, (fi, fo), jnp.float32, -bound, bound)
        b = jax.random.uniform(kb, (1, fo), jnp.float32, -bound, bound)
        return w, b

    keys = jax.random.split(key, 5)
    p["e0w"], p["e0b_lin"] = linear(keys[0], 1 + NUM_LABELS, H1)
    p["e0g"], p["e0be"] = jnp.ones((1, H1), jnp.float32), jnp.zeros((1, H1), jnp.float32)
    p["e1w"], p["e1b_lin"] = linear(keys[1], H1, H2)
    p["e1g"], p["e1be"] = jnp.ones((1, H2), jnp.float32), jnp.zeros((1, H2), jnp.float32)
    p["d0w"], p["d0b_lin"] = linear(keys[2], H2 + NUM_LABELS, H2)
    p["d0g"], p["d0be"] = jnp.ones((1, H2), jnp.float32), jnp.zeros((1, H2), jnp.float32)
    p["d1w"], p["d1b_lin"] = linear(keys[3], H2, H1)
    p["d1g"], p["d1be"] = jnp.ones((1, H1), jnp.float32), jnp.zeros((1, H1), jnp.float32)
    p["fw"], p["fb"] = linear(keys[4], H1, 1)
    return p


def pack_params(p):
    """Pack all weights and gamma/beta/bias vectors into one (32,128) slab."""
    slab = jnp.zeros((SLAB_ROWS, SLAB_COLS), jnp.float32)

    def put(s, name, val):
        r, c, nr, nc = LAYOUT[name]
        assert val.shape == (nr, nc), (name, val.shape, (nr, nc))
        return s.at[r:r + nr, c:c + nc].set(val)

    slab = put(slab, "e0wx", p["e0w"][0:1, :])
    slab = put(slab, "e0wy", p["e0w"][1:1 + NUM_LABELS, :])
    slab = put(slab, "e1w", p["e1w"])
    slab = put(slab, "d0wz", p["d0w"][:H2, :])
    slab = put(slab, "d0wy", p["d0w"][H2:H2 + NUM_LABELS, :])
    slab = put(slab, "d1w", p["d1w"])
    slab = put(slab, "fw", p["fw"])

    slab = put(slab, "e0g", p["e0g"])
    slab = put(slab, "e0b", p["e0be"])
    slab = put(slab, "e1g", p["e1g"])
    slab = put(slab, "e1b", p["e1be"])
    slab = put(slab, "d0g", p["d0g"])
    slab = put(slab, "d0b", p["d0be"])
    slab = put(slab, "d1g", p["d1g"])
    slab = put(slab, "d1b", p["d1be"])
    slab = put(slab, "fb", p["fb"])
    return slab


# ----------------------------- wrapper ---------------------------------------
@jax.jit
def cvnp_forward(X_train, y_train, y_target, w_slab):
    N = X_train.shape[0]
    x = X_train.reshape(N, 1)
    vmem = pl.BlockSpec(memory_space=pltpu.MemorySpace.VMEM)
    return pl.pallas_call(
        cvnp_kernel,
        out_shape=jax.ShapeDtypeStruct((N, 1), jnp.float32),
        in_specs=[vmem] * 4,
        out_specs=vmem,
    )(x, y_train, y_target, w_slab)


# ---------------------- pure-JAX reference (original math) ------------------
def cvnp_ref(X_train, y_train, y_target, p):
    def bn_relu(h, g, b):
        m = jnp.mean(h, axis=0, keepdims=True)
        v = jnp.mean((h - m) ** 2, axis=0, keepdims=True)
        return jnp.maximum((h - m) / jnp.sqrt(v + BN_EPS) * g + b, 0.0)

    N = X_train.shape[0]
    h = jnp.concatenate([X_train.reshape(N, 1), y_train], axis=1)
    h = bn_relu(h @ p["e0w"] + p["e0b_lin"], p["e0g"], p["e0be"])
    z = bn_relu(h @ p["e1w"] + p["e1b_lin"], p["e1g"], p["e1be"])
    d = jnp.concatenate([z, y_target], axis=1)
    d = bn_relu(d @ p["d0w"] + p["d0b_lin"], p["d0g"], p["d0be"])
    d = bn_relu(d @ p["d1w"] + p["d1b_lin"], p["d1g"], p["d1be"])
    return d @ p["fw"] + p["fb"]


if __name__ == "__main__":
    key = jax.random.PRNGKey(0)
    k_par, k_x, k_yt, k_ytg = jax.random.split(key, 4)

    N = 64  # batch of context/target points
    params = init_params(k_par)
    w_slab = pack_params(params)

    X_train = jax.random.normal(k_x, (N,), jnp.float32)
    y_train = jax.random.normal(k_yt, (N, NUM_LABELS), jnp.float32)
    y_target = jax.random.normal(k_ytg, (N, NUM_LABELS), jnp.float32)

    out = cvnp_forward(X_train, y_train, y_target, w_slab)
    out = jax.block_until_ready(out)

    ref = cvnp_ref(X_train, y_train, y_target, params)
    assert out.shape == (N, 1), out.shape
    max_err = float(jnp.max(jnp.abs(out - ref)))
    assert jnp.allclose(out, ref, atol=1e-4, rtol=1e-4), max_err
    print("KERNEL_OK")
</pallas_src>

<mosaic_0001>
module attributes {stable_mosaic.version = 11 : i64} {
  func.func @cvnp_kernel(%arg0: memref<64x1xf32, #tpu.memory_space<vmem>>, %arg1: memref<64x4xf32, #tpu.memory_space<vmem>>, %arg2: memref<64x4xf32, #tpu.memory_space<vmem>>, %arg3: memref<32x128xf32, #tpu.memory_space<vmem>>, %arg4: memref<64x1xf32, #tpu.memory_space<vmem>>) attributes {dimension_semantics = [], scalar_prefetch = 0 : i64, scratch_operands = 0 : i64, tpu.core_type = #tpu.core_type<tc>} {
    %c0 = arith.constant 0 : index
    %c0_0 = arith.constant 0 : index
    %0 = vector.load %arg0[%c0, %c0_0] : memref<64x1xf32, #tpu.memory_space<vmem>>, vector<64x1xf32>
    %c0_1 = arith.constant 0 : index
    %c0_2 = arith.constant 0 : index
    %1 = vector.load %arg1[%c0_1, %c0_2] : memref<64x4xf32, #tpu.memory_space<vmem>>, vector<64x4xf32>
    %c0_3 = arith.constant 0 : index
    %c0_4 = arith.constant 0 : index
    %2 = vector.load %arg2[%c0_3, %c0_4] : memref<64x4xf32, #tpu.memory_space<vmem>>, vector<64x4xf32>
    %c0_5 = arith.constant 0 : index
    %c80 = arith.constant 80 : index
    %3 = vector.load %arg3[%c0_5, %c80] : memref<32x128xf32, #tpu.memory_space<vmem>>, vector<1x16xf32>
    %c8 = arith.constant 8 : index
    %c80_6 = arith.constant 80 : index
    %4 = vector.load %arg3[%c8, %c80_6] : memref<32x128xf32, #tpu.memory_space<vmem>>, vector<4x16xf32>
    %c0_7 = arith.constant 0 : index
    %c32 = arith.constant 32 : index
    %5 = vector.load %arg3[%c0_7, %c32] : memref<32x128xf32, #tpu.memory_space<vmem>>, vector<16x32xf32>
    %c0_8 = arith.constant 0 : index
    %c0_9 = arith.constant 0 : index
    %6 = vector.load %arg3[%c0_8, %c0_9] : memref<32x128xf32, #tpu.memory_space<vmem>>, vector<32x32xf32>
    %c16 = arith.constant 16 : index
    %c32_10 = arith.constant 32 : index
    %7 = vector.load %arg3[%c16, %c32_10] : memref<32x128xf32, #tpu.memory_space<vmem>>, vector<4x32xf32>
    %c0_11 = arith.constant 0 : index
    %c64 = arith.constant 64 : index
    %8 = vector.load %arg3[%c0_11, %c64] : memref<32x128xf32, #tpu.memory_space<vmem>>, vector<32x16xf32>
    %c0_12 = arith.constant 0 : index
    %c96 = arith.constant 96 : index
    %9 = vector.load %arg3[%c0_12, %c96] : memref<32x128xf32, #tpu.memory_space<vmem>>, vector<16x1xf32>
    %c16_13 = arith.constant 16 : index
    %c80_14 = arith.constant 80 : index
    %10 = vector.load %arg3[%c16_13, %c80_14] : memref<32x128xf32, #tpu.memory_space<vmem>>, vector<1x16xf32>
    %c17 = arith.constant 17 : index
    %c80_15 = arith.constant 80 : index
    %11 = vector.load %arg3[%c17, %c80_15] : memref<32x128xf32, #tpu.memory_space<vmem>>, vector<1x16xf32>
    %c24 = arith.constant 24 : index
    %c32_16 = arith.constant 32 : index
    %12 = vector.load %arg3[%c24, %c32_16] : memref<32x128xf32, #tpu.memory_space<vmem>>, vector<1x32xf32>
    %c25 = arith.constant 25 : index
    %c32_17 = arith.constant 32 : index
    %13 = vector.load %arg3[%c25, %c32_17] : memref<32x128xf32, #tpu.memory_space<vmem>>, vector<1x32xf32>
    %c26 = arith.constant 26 : index
    %c32_18 = arith.constant 32 : index
    %14 = vector.load %arg3[%c26, %c32_18] : memref<32x128xf32, #tpu.memory_space<vmem>>, vector<1x32xf32>
    %c27 = arith.constant 27 : index
    %c32_19 = arith.constant 32 : index
    %15 = vector.load %arg3[%c27, %c32_19] : memref<32x128xf32, #tpu.memory_space<vmem>>, vector<1x32xf32>
    %c18 = arith.constant 18 : index
    %c80_20 = arith.constant 80 : index
    %16 = vector.load %arg3[%c18, %c80_20] : memref<32x128xf32, #tpu.memory_space<vmem>>, vector<1x16xf32>
    %c19 = arith.constant 19 : index
    %c80_21 = arith.constant 80 : index
    %17 = vector.load %arg3[%c19, %c80_21] : memref<32x128xf32, #tpu.memory_space<vmem>>, vector<1x16xf32>
    %c16_22 = arith.constant 16 : index
    %c96_23 = arith.constant 96 : index
    %18 = vector.load %arg3[%c16_22, %c96_23] : memref<32x128xf32, #tpu.memory_space<vmem>>, vector<1x1xf32>
    %19 = vector.broadcast %0 : vector<64x1xf32> to vector<64x16xf32>
    %20 = vector.broadcast %3 : vector<1x16xf32> to vector<64x16xf32>
    %21 = arith.mulf %19, %20 : vector<64x16xf32>
    %cst = arith.constant dense<0.000000e+00> : vector<64x16xf32>
    %22 = tpu.matmul %1, %4, %cst {dimension_numbers = #tpu.dot_dimension_numbers<[1], [0], [0], [1], [0, 0, 1, 1], [], []>} : vector<64x4xf32>, vector<4x16xf32>, vector<64x16xf32> -> vector<64x16xf32>
    %23 = arith.addf %21, %22 : vector<64x16xf32>
    %cst_24 = arith.constant dense<0.000000e+00> : vector<16xf32>
    %24 = vector.multi_reduction <add>, %23, %cst_24 [0] : vector<64x16xf32> to vector<16xf32>
    %25 = vector.shape_cast %24 : vector<16xf32> to vector<1x16xf32>
    %cst_25 = arith.constant 1.562500e-02 : f32
    %26 = vector.broadcast %cst_25 : f32 to vector<1x16xf32>
    %27 = arith.mulf %25, %26 : vector<1x16xf32>
    %28 = vector.broadcast %27 : vector<1x16xf32> to vector<64x16xf32>
    %29 = arith.subf %23, %28 : vector<64x16xf32>
    %30 = arith.mulf %29, %29 : vector<64x16xf32>
    %cst_26 = arith.constant dense<0.000000e+00> : vector<16xf32>
    %31 = vector.multi_reduction <add>, %30, %cst_26 [0] : vector<64x16xf32> to vector<16xf32>
    %32 = vector.shape_cast %31 : vector<16xf32> to vector<1x16xf32>
    %cst_27 = arith.constant 1.562500e-02 : f32
    %33 = vector.broadcast %cst_27 : f32 to vector<1x16xf32>
    %34 = arith.mulf %32, %33 : vector<1x16xf32>
    %cst_28 = arith.constant 9.99999974E-6 : f32
    %35 = vector.broadcast %cst_28 : f32 to vector<1x16xf32>
    %36 = arith.addf %34, %35 : vector<1x16xf32>
    %37 = math.rsqrt %36 : vector<1x16xf32>
    %38 = vector.broadcast %37 : vector<1x16xf32> to vector<64x16xf32>
    %39 = arith.mulf %29, %38 : vector<64x16xf32>
    %40 = vector.broadcast %10 : vector<1x16xf32> to vector<64x16xf32>
    %41 = arith.mulf %39, %40 : vector<64x16xf32>
    %42 = vector.broadcast %11 : vector<1x16xf32> to vector<64x16xf32>
    %43 = arith.addf %41, %42 : vector<64x16xf32>
    %cst_29 = arith.constant 0.000000e+00 : f32
    %44 = vector.broadcast %cst_29 : f32 to vector<64x16xf32>
    %45 = arith.maximumf %43, %44 : vector<64x16xf32>
    %cst_30 = arith.constant dense<0.000000e+00> : vector<64x32xf32>
    %46 = tpu.matmul %45, %5, %cst_30 {dimension_numbers = #tpu.dot_dimension_numbers<[1], [0], [0], [1], [0, 0, 1, 1], [], []>} : vector<64x16xf32>, vector<16x32xf32>, vector<64x32xf32> -> vector<64x32xf32>
    %cst_31 = arith.constant dense<0.000000e+00> : vector<32xf32>
    %47 = vector.multi_reduction <add>, %46, %cst_31 [0] : vector<64x32xf32> to vector<32xf32>
    %48 = vector.shape_cast %47 : vector<32xf32> to vector<1x32xf32>
    %cst_32 = arith.constant 1.562500e-02 : f32
    %49 = vector.broadcast %cst_32 : f32 to vector<1x32xf32>
    %50 = arith.mulf %48, %49 : vector<1x32xf32>
    %51 = vector.broadcast %50 : vector<1x32xf32> to vector<64x32xf32>
    %52 = arith.subf %46, %51 : vector<64x32xf32>
    %53 = arith.mulf %52, %52 : vector<64x32xf32>
    %cst_33 = arith.constant dense<0.000000e+00> : vector<32xf32>
    %54 = vector.multi_reduction <add>, %53, %cst_33 [0] : vector<64x32xf32> to vector<32xf32>
    %55 = vector.shape_cast %54 : vector<32xf32> to vector<1x32xf32>
    %cst_34 = arith.constant 1.562500e-02 : f32
    %56 = vector.broadcast %cst_34 : f32 to vector<1x32xf32>
    %57 = arith.mulf %55, %56 : vector<1x32xf32>
    %cst_35 = arith.constant 9.99999974E-6 : f32
    %58 = vector.broadcast %cst_35 : f32 to vector<1x32xf32>
    %59 = arith.addf %57, %58 : vector<1x32xf32>
    %60 = math.rsqrt %59 : vector<1x32xf32>
    %61 = vector.broadcast %60 : vector<1x32xf32> to vector<64x32xf32>
    %62 = arith.mulf %52, %61 : vector<64x32xf32>
    %63 = vector.broadcast %12 : vector<1x32xf32> to vector<64x32xf32>
    %64 = arith.mulf %62, %63 : vector<64x32xf32>
    %65 = vector.broadcast %13 : vector<1x32xf32> to vector<64x32xf32>
    %66 = arith.addf %64, %65 : vector<64x32xf32>
    %cst_36 = arith.constant 0.000000e+00 : f32
    %67 = vector.broadcast %cst_36 : f32 to vector<64x32xf32>
    %68 = arith.maximumf %66, %67 : vector<64x32xf32>
    %cst_37 = arith.constant dense<0.000000e+00> : vector<64x32xf32>
    %69 = tpu.matmul %68, %6, %cst_37 {dimension_numbers = #tpu.dot_dimension_numbers<[1], [0], [0], [1], [0, 0, 1, 1], [], []>} : vector<64x32xf32>, vector<32x32xf32>, vector<64x32xf32> -> vector<64x32xf32>
    %cst_38 = arith.constant dense<0.000000e+00> : vector<64x32xf32>
    %70 = tpu.matmul %2, %7, %cst_38 {dimension_numbers = #tpu.dot_dimension_numbers<[1], [0], [0], [1], [0, 0, 1, 1], [], []>} : vector<64x4xf32>, vector<4x32xf32>, vector<64x32xf32> -> vector<64x32xf32>
    %71 = arith.addf %69, %70 : vector<64x32xf32>
    %cst_39 = arith.constant dense<0.000000e+00> : vector<32xf32>
    %72 = vector.multi_reduction <add>, %71, %cst_39 [0] : vector<64x32xf32> to vector<32xf32>
    %73 = vector.shape_cast %72 : vector<32xf32> to vector<1x32xf32>
    %cst_40 = arith.constant 1.562500e-02 : f32
    %74 = vector.broadcast %cst_40 : f32 to vector<1x32xf32>
    %75 = arith.mulf %73, %74 : vector<1x32xf32>
    %76 = vector.broadcast %75 : vector<1x32xf32> to vector<64x32xf32>
    %77 = arith.subf %71, %76 : vector<64x32xf32>
    %78 = arith.mulf %77, %77 : vector<64x32xf32>
    %cst_41 = arith.constant dense<0.000000e+00> : vector<32xf32>
    %79 = vector.multi_reduction <add>, %78, %cst_41 [0] : vector<64x32xf32> to vector<32xf32>
    %80 = vector.shape_cast %79 : vector<32xf32> to vector<1x32xf32>
    %cst_42 = arith.constant 1.562500e-02 : f32
    %81 = vector.broadcast %cst_42 : f32 to vector<1x32xf32>
    %82 = arith.mulf %80, %81 : vector<1x32xf32>
    %cst_43 = arith.constant 9.99999974E-6 : f32
    %83 = vector.broadcast %cst_43 : f32 to vector<1x32xf32>
    %84 = arith.addf %82, %83 : vector<1x32xf32>
    %85 = math.rsqrt %84 : vector<1x32xf32>
    %86 = vector.broadcast %85 : vector<1x32xf32> to vector<64x32xf32>
    %87 = arith.mulf %77, %86 : vector<64x32xf32>
    %88 = vector.broadcast %14 : vector<1x32xf32> to vector<64x32xf32>
    %89 = arith.mulf %87, %88 : vector<64x32xf32>
    %90 = vector.broadcast %15 : vector<1x32xf32> to vector<64x32xf32>
    %91 = arith.addf %89, %90 : vector<64x32xf32>
    %cst_44 = arith.constant 0.000000e+00 : f32
    %92 = vector.broadcast %cst_44 : f32 to vector<64x32xf32>
    %93 = arith.maximumf %91, %92 : vector<64x32xf32>
    %cst_45 = arith.constant dense<0.000000e+00> : vector<64x16xf32>
    %94 = tpu.matmul %93, %8, %cst_45 {dimension_numbers = #tpu.dot_dimension_numbers<[1], [0], [0], [1], [0, 0, 1, 1], [], []>} : vector<64x32xf32>, vector<32x16xf32>, vector<64x16xf32> -> vector<64x16xf32>
    %cst_46 = arith.constant dense<0.000000e+00> : vector<16xf32>
    %95 = vector.multi_reduction <add>, %94, %cst_46 [0] : vector<64x16xf32> to vector<16xf32>
    %96 = vector.shape_cast %95 : vector<16xf32> to vector<1x16xf32>
    %cst_47 = arith.constant 1.562500e-02 : f32
    %97 = vector.broadcast %cst_47 : f32 to vector<1x16xf32>
    %98 = arith.mulf %96, %97 : vector<1x16xf32>
    %99 = vector.broadcast %98 : vector<1x16xf32> to vector<64x16xf32>
    %100 = arith.subf %94, %99 : vector<64x16xf32>
    %101 = arith.mulf %100, %100 : vector<64x16xf32>
    %cst_48 = arith.constant dense<0.000000e+00> : vector<16xf32>
    %102 = vector.multi_reduction <add>, %101, %cst_48 [0] : vector<64x16xf32> to vector<16xf32>
    %103 = vector.shape_cast %102 : vector<16xf32> to vector<1x16xf32>
    %cst_49 = arith.constant 1.562500e-02 : f32
    %104 = vector.broadcast %cst_49 : f32 to vector<1x16xf32>
    %105 = arith.mulf %103, %104 : vector<1x16xf32>
    %cst_50 = arith.constant 9.99999974E-6 : f32
    %106 = vector.broadcast %cst_50 : f32 to vector<1x16xf32>
    %107 = arith.addf %105, %106 : vector<1x16xf32>
    %108 = math.rsqrt %107 : vector<1x16xf32>
    %109 = vector.broadcast %108 : vector<1x16xf32> to vector<64x16xf32>
    %110 = arith.mulf %100, %109 : vector<64x16xf32>
    %111 = vector.broadcast %16 : vector<1x16xf32> to vector<64x16xf32>
    %112 = arith.mulf %110, %111 : vector<64x16xf32>
    %113 = vector.broadcast %17 : vector<1x16xf32> to vector<64x16xf32>
    %114 = arith.addf %112, %113 : vector<64x16xf32>
    %cst_51 = arith.constant 0.000000e+00 : f32
    %115 = vector.broadcast %cst_51 : f32 to vector<64x16xf32>
    %116 = arith.maximumf %114, %115 : vector<64x16xf32>
    %cst_52 = arith.constant dense<0.000000e+00> : vector<64x1xf32>
    %117 = tpu.matmul %116, %9, %cst_52 {dimension_numbers = #tpu.dot_dimension_numbers<[1], [0], [0], [1], [0, 0, 1, 1], [], []>} : vector<64x16xf32>, vector<16x1xf32>, vector<64x1xf32> -> vector<64x1xf32>
    %118 = vector.broadcast %18 : vector<1x1xf32> to vector<64x1xf32>
    %119 = arith.addf %117, %118 : vector<64x1xf32>
    %c0_53 = arith.constant 0 : index
    %c0_54 = arith.constant 0 : index
    %120 = vector.load %arg4[%c0_53, %c0_54] : memref<64x1xf32, #tpu.memory_space<vmem>>, vector<64x1xf32>
    tpu.vector_store %arg4[%c0_53, %c0_54], %119 {strides = array<i32>} : memref<64x1xf32, #tpu.memory_space<vmem>>, vector<64x1xf32>,
    return
  }
}

</mosaic_0001>

<llo_original>
// kernel: cvnp_forward.1
$region0: #{cvnp_forward.1}
  #allocation0 [shape = 'u32[]', space=smem, size = 0x4, offset = 0x4, fixed_abs, tag = 'smem constant byte address 0x4 - core index']
  #allocation1 [shape = 'u32[144,128]{1,0:T(1,128)}', space=vmem, size = 0x12000, scoped, tag = 'internal scratch']
  %s0 = inlined_call_operand.vmem [shape: f32[64,1], index: 0, kind: input, shape index: {}]
  %s1 = inlined_call_operand.vmem [shape: f32[64,4], index: 1, kind: input, shape index: {}]
  %s2 = inlined_call_operand.vmem [shape: f32[64,4], index: 2, kind: input, shape index: {}]
  %s3 = inlined_call_operand.vmem [shape: f32[32,128], index: 3, kind: input, shape index: {}]
  %s4 = inlined_call_operand.vmem [shape: f32[64,1], index: 4, kind: output, shape index: {}]
  %s5 = sld [smem:[#allocation0]]
  $region26: #{cvnp_forward.1} parent=0
    _
  %s7 = ssub.s32 1, %s5
  %s8 = scalar_select 0, %s7, %s5
  // Predicated region
  $region2: #{cvnp_forward.1} parent=0 // pred_check
    _
  $region3: #{cvnp_forward.1} parent=0 // pred_check_branch
    %10 = sbr.rel (0) target = $region5
  $region4: #{cvnp_forward.1} parent=0 // pred_region
    _
  $region5: #{cvnp_forward.1} parent=0 // pred_fallthru
    _
  // Predicated region
  $region6: #{cvnp_forward.1} parent=0 // pred_check
    _
  $region7: #{cvnp_forward.1} parent=0 // pred_check_branch
    %12 = sbr.rel (0) target = $region9
  $region8: #{cvnp_forward.1} parent=0 // pred_region
    _
  $region9: #{cvnp_forward.1} parent=0 // pred_fallthru
    _
  // Predicated region
  $region10: #{cvnp_forward.1} parent=0 // pred_check
    _
  $region11: #{cvnp_forward.1} parent=0 // pred_check_branch
    %14 = sbr.rel (0) target = $region13
  $region12: #{cvnp_forward.1} parent=0 // pred_region
    _
  $region13: #{cvnp_forward.1} parent=0 // pred_fallthru
    _
  // Predicated region
  $region14: #{cvnp_forward.1} parent=0 // pred_check
    _
  $region15: #{cvnp_forward.1} parent=0 // pred_check_branch
    %16 = sbr.rel (0) target = $region17
  $region16: #{cvnp_forward.1} parent=0 // pred_region
    _
  $region17: #{cvnp_forward.1} parent=0 // pred_fallthru
    _
  %v17 = vld [vmem:[%s0] sm:$0xff]
  %v18 = vld [vmem:[%s0 + $0x8] sm:$0xff]
  %v19 = vld [vmem:[%s0 + $0x10] sm:$0xff]
  %v20 = vld [vmem:[%s0 + $0x18] sm:$0xff]
  %v21 = vld [vmem:[%s0 + $0x20] sm:$0xff]
  %v22 = vld [vmem:[%s0 + $0x28] sm:$0xff]
  %v23 = vld [vmem:[%s0 + $0x30] sm:$0xff]
  %v24 = vld [vmem:[%s0 + $0x38] sm:$0xff]
  %v25 = vld [vmem:[%s1] sm:$0xff]
  %v26 = vld [vmem:[%s1 + $0x8] sm:$0xff]
  %v27 = vld [vmem:[%s1 + $0x10] sm:$0xff]
  %v28 = vld [vmem:[%s1 + $0x18] sm:$0xff]
  %v29 = vld [vmem:[%s1 + $0x20] sm:$0xff]
  %v30 = vld [vmem:[%s1 + $0x28] sm:$0xff]
  %v31 = vld [vmem:[%s1 + $0x30] sm:$0xff]
  %v32 = vld [vmem:[%s1 + $0x38] sm:$0xff]
  %v33 = vld [vmem:[%s2] sm:$0xff]
  %v34 = vld [vmem:[%s2 + $0x8] sm:$0xff]
  %v35 = vld [vmem:[%s2 + $0x10] sm:$0xff]
  %v36 = vld [vmem:[%s2 + $0x18] sm:$0xff]
  %v37 = vld [vmem:[%s2 + $0x20] sm:$0xff]
  %v38 = vld [vmem:[%s2 + $0x28] sm:$0xff]
  %v39 = vld [vmem:[%s2 + $0x30] sm:$0xff]
  %v40 = vld [vmem:[%s2 + $0x38] sm:$0xff]
  %v41 = vld [vmem:[%s3] sm:$0x1]
  %v42 = vld [vmem:[%s3 + $0x8] sm:$0xf]
  %v43 = vld [vmem:[%s3] sm:$0xff]
  %v44 = vld [vmem:[%s3 + $0x8] sm:$0xff]
  %v45 = vld [vmem:[%s3] sm:$0xff]
  %v46 = vld [vmem:[%s3 + $0x8] sm:$0xff]
  %v47 = vld [vmem:[%s3 + $0x10] sm:$0xff]
  %v48 = vld [vmem:[%s3 + $0x18] sm:$0xff]
  %v49 = vld [vmem:[%s3 + $0x10] sm:$0xf]
  %v50 = vld [vmem:[%s3 + $0x10] sm:$0x1]
  %v51 = vld [vmem:[%s3 + $0x11] sm:$0x1]
  %v52 = vld [vmem:[%s3 + $0x18] sm:$0x1]
  %v53 = vld [vmem:[%s3 + $0x19] sm:$0x1]
  %v54 = vld [vmem:[%s3 + $0x1a] sm:$0x1]
  %v55 = vld [vmem:[%s3 + $0x1b] sm:$0x1]
  %v56 = vld [vmem:[%s3 + $0x12] sm:$0x1]
  %v57 = vld [vmem:[%s3 + $0x13] sm:$0x1]
  %59 = vset.pattern.permute.xlu0 0
  %60 = vperm.xlu0 %59, %v17
  %v61 = vpop.permute.xlu0 %60
  %64 = vset.pattern.permute.xlu0 0
  %65 = vperm.xlu0 %64, %v18
  %v66 = vpop.permute.xlu0 %65
  %69 = vset.pattern.permute.xlu0 0
  %70 = vperm.xlu0 %69, %v19
  %v71 = vpop.permute.xlu0 %70
  %74 = vset.pattern.permute.xlu0 0
  %75 = vperm.xlu0 %74, %v20
  %v76 = vpop.permute.xlu0 %75
  %79 = vset.pattern.permute.xlu0 0
  %80 = vperm.xlu0 %79, %v21
  %v81 = vpop.permute.xlu0 %80
  %84 = vset.pattern.permute.xlu0 0
  %85 = vperm.xlu0 %84, %v22
  %v86 = vpop.permute.xlu0 %85
  %89 = vset.pattern.permute.xlu0 0
  %90 = vperm.xlu0 %89, %v23
  %v91 = vpop.permute.xlu0 %90
  %94 = vset.pattern.permute.xlu0 0
  %95 = vperm.xlu0 %94, %v24
  %v96 = vpop.permute.xlu0 %95
  %v98 = vlaneseq
  %v99 = vshrl.u32 %v98, 7
  %v100 = vsub.s32 0, %v99
  %v101 = vrot.slane %v41, %v100
  %v102 = vmul.f32 %v61, %v101
  %v103 = vmul.f32 %v66, %v101
  %v104 = vmul.f32 %v71, %v101
  %v105 = vmul.f32 %v76, %v101
  %v106 = vmul.f32 %v81, %v101
  %v107 = vmul.f32 %v86, %v101
  %v108 = vmul.f32 %v91, %v101
  %v109 = vmul.f32 %v96, %v101
  %111 = vrot.lane.b32.xlu0 %v42, 48
  %v112 = vpop.permute.xlu0 %111
  %vm113 = vcmask 31744
  %v115 = vsel %vm113, %v25, 0
  %v118 = vsel %vm113, %v26, 0
  %v121 = vsel %vm113, %v27, 0
  %v124 = vsel %vm113, %v28, 0
  %v127 = vsel %vm113, %v29, 0
  %v130 = vsel %vm113, %v30, 0
  %v133 = vsel %vm113, %v31, 0
  %v136 = vsel %vm113, %v32, 0
  %vm138 = vcmask 1043456
  %v139 = vsel %vm138, %v112, 0
  %141 = vmatprep.subr.mxu0 0.0
  %142 = vmatpush1.msra.mxu0 0.0
  %143 = vmatprep.subr.mxu0 0.0
  %144 = vmatpush1.msra.mxu0 0.0
  %145 = vmatprep.subr.mxu0 0.0
  %146 = vmatpush1.msra.mxu0 0.0
  %147 = vmatprep.subr.mxu0 0.0
  %148 = vmatpush1.msra.mxu0 0.0
  %149 = vmatprep.subr.mxu0 0.0
  %150 = vmatpush1.msra.mxu0 0.0
  %151 = vmatprep.subr.mxu0 0.0
  %152 = vmatpush1.msra.mxu0 0.0
  %153 = vmatprep.subr.mxu0 0.0
  %154 = vmatpush1.msra.mxu0 0.0
  %155 = vmatprep.subr.mxu0 0.0
  %156 = vmatpush1.msra.mxu0 0.0
  %157 = vmatprep.subr.mxu0 0.0
  %158 = vmatpush1.msra.mxu0 0.0
  %159 = vmatprep.subr.mxu0 0.0
  %160 = vmatpush1.msra.mxu0 0.0
  %161 = vmatprep.subr.mxu0 0.0
  %162 = vmatpush1.msra.mxu0 0.0
  %163 = vmatprep.subr.mxu0 0.0
  %164 = vmatpush1.msra.mxu0 0.0
  %165 = vmatprep.subr.mxu0 0.0
  %166 = vmatpush1.msra.mxu0 0.0
  %167 = vmatprep.subr.mxu0 0.0
  %168 = vmatpush1.msra.mxu0 0.0
  %169 = vmatprep.subr.mxu0 0.0
  %170 = vmatpush1.msra.mxu0 0.0
  %171 = vmatprep.subr.mxu0 0.0
  %172 = vmatpush1.msra.mxu0 %v139
  %173 = vmatprep.subr.mxu0 0.0
  %174 = vmatpush2.msra.mxu0 0.0
  %175 = vmatprep.subr.mxu0 0.0
  %176 = vmatpush2.msra.mxu0 0.0
  %177 = vmatprep.subr.mxu0 0.0
  %178 = vmatpush2.msra.mxu0 0.0
  %179 = vmatprep.subr.mxu0 0.0
  %180 = vmatpush2.msra.mxu0 0.0
  %181 = vmatprep.subr.mxu0 0.0
  %182 = vmatpush2.msra.mxu0 0.0
  %183 = vmatprep.subr.mxu0 0.0
  %184 = vmatpush2.msra.mxu0 0.0
  %185 = vmatprep.subr.mxu0 0.0
  %186 = vmatpush2.msra.mxu0 0.0
  %187 = vmatprep.subr.mxu0 0.0
  %188 = vmatpush2.msra.mxu0 0.0
  %189 = vmatprep.subr.mxu0 0.0
  %190 = vmatpush2.msra.mxu0 0.0
  %191 = vmatprep.subr.mxu0 0.0
  %192 = vmatpush2.msra.mxu0 0.0
  %193 = vmatprep.subr.mxu0 0.0
  %194 = vmatpush2.msra.mxu0 0.0
  %195 = vmatprep.subr.mxu0 0.0
  %196 = vmatpush2.msra.mxu0 0.0
  %197 = vmatprep.subr.mxu0 0.0
  %198 = vmatpush2.msra.mxu0 0.0
  %199 = vmatprep.subr.mxu0 0.0
  %200 = vmatpush2.msra.mxu0 0.0
  %201 = vmatprep.subr.mxu0 0.0
  %202 = vmatpush2.msra.mxu0 0.0
  %203 = vmatprep.subr.mxu0 0.0
  %204 = vmatpush2.msra.mxu0 0.0
  %205 = vmatprep.mubr.f32.mxu0 0.0
  %206 = vmatmul.mubr.f32.gmra.mxu0 %v115
  %v207 = vpop.f32.mrf.mxu0
  %v208 = vadd.f32 0.0, %v207
  %v209 = vpop.f32.mrf.mxu0
  %210 = vmatprep.mubr.f32.mxu0 0.0
  %211 = vmatmul.mubr.f32.gmra.mxu0 %v118
  %v212 = vpop.f32.mrf.mxu0
  %v213 = vadd.f32 0.0, %v212
  %v214 = vpop.f32.mrf.mxu0
  %215 = vmatprep.mubr.f32.mxu0 0.0
  %216 = vmatmul.mubr.f32.gmra.mxu0 %v121
  %v217 = vpop.f32.mrf.mxu0
  %v218 = vadd.f32 0.0, %v217
  %v219 = vpop.f32.mrf.mxu0
  %220 = vmatprep.mubr.f32.mxu0 0.0
  %221 = vmatmul.mubr.f32.gmra.mxu0 %v124
  %v222 = vpop.f32.mrf.mxu0
  %v223 = vadd.f32 0.0, %v222
  %v224 = vpop.f32.mrf.mxu0
  %225 = vmatprep.mubr.f32.mxu0 0.0
  %226 = vmatmul.mubr.f32.gmra.mxu0 %v127
  %v227 = vpop.f32.mrf.mxu0
  %v228 = vadd.f32 0.0, %v227
  %v229 = vpop.f32.mrf.mxu0
  %230 = vmatprep.mubr.f32.mxu0 0.0
  %231 = vmatmul.mubr.f32.gmra.mxu0 %v130
  %v232 = vpop.f32.mrf.mxu0
  %v233 = vadd.f32 0.0, %v232
  %v234 = vpop.f32.mrf.mxu0
  %235 = vmatprep.mubr.f32.mxu0 0.0
  %236 = vmatmul.mubr.f32.gmra.mxu0 %v133
  %v237 = vpop.f32.mrf.mxu0
  %v238 = vadd.f32 0.0, %v237
  %v239 = vpop.f32.mrf.mxu0
  %240 = vmatprep.mubr.f32.mxu0 0.0
  %241 = vmatmul.mubr.f32.gmra.mxu0 %v136
  %v242 = vpop.f32.mrf.mxu0
  %v243 = vadd.f32 0.0, %v242
  %v244 = vpop.f32.mrf.mxu0
  %245 = vdwg.mxu0
  %254 = vrot.lane.b32.xlu0 %v208, 80
  %v255 = vpop.permute.xlu0 %254
  %256 = vrot.lane.b32.xlu0 %v213, 80
  %v257 = vpop.permute.xlu0 %256
  %258 = vrot.lane.b32.xlu0 %v218, 80
  %v259 = vpop.permute.xlu0 %258
  %260 = vrot.lane.b32.xlu0 %v223, 80
  %v261 = vpop.permute.xlu0 %260
  %262 = vrot.lane.b32.xlu0 %v228, 80
  %v263 = vpop.permute.xlu0 %262
  %264 = vrot.lane.b32.xlu0 %v233, 80
  %v265 = vpop.permute.xlu0 %264
  %266 = vrot.lane.b32.xlu0 %v238, 80
  %v267 = vpop.permute.xlu0 %266
  %268 = vrot.lane.b32.xlu0 %v243, 80
  %v269 = vpop.permute.xlu0 %268
  %v278 = vadd.f32 %v102, %v255
  %v279 = vadd.f32 %v103, %v257
  %v280 = vadd.f32 %v104, %v259
  %v281 = vadd.f32 %v105, %v261
  %v282 = vadd.f32 %v106, %v263
  %v283 = vadd.f32 %v107, %v265
  %v284 = vadd.f32 %v108, %v267
  %v285 = vadd.f32 %v109, %v269
  %vm286 = vcmask 786048
  %v287 = vsel %vm286, %v278, 0.0
  %v288 = vsel %vm286, %v279, 0.0
  %v289 = vadd.f32 %v287, %v288
  %v290 = vsel %vm286, %v280, 0.0
  %v291 = vadd.f32 %v289, %v290
  %v292 = vsel %vm286, %v281, 0.0
  %v293 = vadd.f32 %v291, %v292
  %v294 = vsel %vm286, %v282, 0.0
  %v295 = vadd.f32 %v293, %v294
  %v296 = vsel %vm286, %v283, 0.0
  %v297 = vadd.f32 %v295, %v296
  %v298 = vsel %vm286, %v284, 0.0
  %v299 = vadd.f32 %v297, %v298
  %v300 = vsel %vm286, %v285, 0.0
  %v301 = vadd.f32 %v299, %v300
  %v302 = vrot.slane %v301, 4
  %v303 = vadd.f32 %v301, %v302
  %v304 = vrot.slane %v303, 2
  %v305 = vadd.f32 %v303, %v304
  %v306 = vrot.slane %v305, 1
  %v307 = vadd.f32 %v305, %v306
  %v308 = vmul.f32 %v307, 0.015625
  %v309 = vsub.f32 %v278, %v308
  %v310 = vsub.f32 %v279, %v308
  %v311 = vsub.f32 %v280, %v308
  %v312 = vsub.f32 %v281, %v308
  %v313 = vsub.f32 %v282, %v308
  %v314 = vsub.f32 %v283, %v308
  %v315 = vsub.f32 %v284, %v308
  %v316 = vsub.f32 %v285, %v308
  %v317 = vmul.f32 %v309, %v309
  %v318 = vmul.f32 %v310, %v310
  %v319 = vmul.f32 %v311, %v311
  %v320 = vmul.f32 %v312, %v312
  %v321 = vmul.f32 %v313, %v313
  %v322 = vmul.f32 %v314, %v314
  %v323 = vmul.f32 %v315, %v315
  %v324 = vmul.f32 %v316, %v316
  %v325 = vsel %vm286, %v317, 0.0
  %v326 = vsel %vm286, %v318, 0.0
  %v327 = vadd.f32 %v325, %v326
  %v328 = vsel %vm286, %v319, 0.0
  %v329 = vadd.f32 %v327, %v328
  %v330 = vsel %vm286, %v320, 0.0
  %v331 = vadd.f32 %v329, %v330
  %v332 = vsel %vm286, %v321, 0.0
  %v333 = vadd.f32 %v331, %v332
  %v334 = vsel %vm286, %v322, 0.0
  %v335 = vadd.f32 %v333, %v334
  %v336 = vsel %vm286, %v323, 0.0
  %v337 = vadd.f32 %v335, %v336
  %v338 = vsel %vm286, %v324, 0.0
  %v339 = vadd.f32 %v337, %v338
  %v340 = vrot.slane %v339, 4
  %v341 = vadd.f32 %v339, %v340
  %v342 = vrot.slane %v341, 2
  %v343 = vadd.f32 %v341, %v342
  %v344 = vrot.slane %v343, 1
  %v345 = vadd.f32 %v343, %v344
  %v346 = vmul.f32 %v345, 0.015625
  %v347 = vadd.f32 %v346, 1e-05
  %v348 = vrsqrt.pop %v347
  %v349 = vmul.f32 %v309, %v348
  %v350 = vmul.f32 %v310, %v348
  %v351 = vmul.f32 %v311, %v348
  %v352 = vmul.f32 %v312, %v348
  %v353 = vmul.f32 %v313, %v348
  %v354 = vmul.f32 %v314, %v348
  %v355 = vmul.f32 %v315, %v348
  %v356 = vmul.f32 %v316, %v348
  %v357 = vlaneseq
  %v358 = vshrl.u32 %v357, 7
  %v359 = vsub.s32 0, %v358
  %v360 = vrot.slane %v50, %v359
  %v361 = vmul.f32 %v349, %v360
  %v362 = vmul.f32 %v350, %v360
  %v363 = vmul.f32 %v351, %v360
  %v364 = vmul.f32 %v352, %v360
  %v365 = vmul.f32 %v353, %v360
  %v366 = vmul.f32 %v354, %v360
  %v367 = vmul.f32 %v355, %v360
  %v368 = vmul.f32 %v356, %v360
  %v369 = vlaneseq
  %v370 = vshrl.u32 %v369, 7
  %v371 = vsub.s32 0, %v370
  %v372 = vrot.slane %v51, %v371
  %v373 = vadd.f32 %v361, %v372
  %v374 = vadd.f32 %v362, %v372
  %v375 = vadd.f32 %v363, %v372
  %v376 = vadd.f32 %v364, %v372
  %v377 = vadd.f32 %v365, %v372
  %v378 = vadd.f32 %v366, %v372
  %v379 = vadd.f32 %v367, %v372
  %v380 = vadd.f32 %v368, %v372
  %v381 = vmax.f32 %v373, 0.0
  %v382 = vmax.f32 %v374, 0.0
  %v383 = vmax.f32 %v375, 0.0
  %v384 = vmax.f32 %v376, 0.0
  %v385 = vmax.f32 %v377, 0.0
  %v386 = vmax.f32 %v378, 0.0
  %v387 = vmax.f32 %v379, 0.0
  %v388 = vmax.f32 %v380, 0.0
  %397 = vrot.lane.b32.xlu0 %v381, 48
  %v398 = vpop.permute.xlu0 %397
  %399 = vrot.lane.b32.xlu0 %v382, 48
  %v400 = vpop.permute.xlu0 %399
  %401 = vrot.lane.b32.xlu0 %v383, 48
  %v402 = vpop.permute.xlu0 %401
  %403 = vrot.lane.b32.xlu0 %v384, 48
  %v404 = vpop.permute.xlu0 %403
  %405 = vrot.lane.b32.xlu0 %v385, 48
  %v406 = vpop.permute.xlu0 %405
  %407 = vrot.lane.b32.xlu0 %v386, 48
  %v408 = vpop.permute.xlu0 %407
  %409 = vrot.lane.b32.xlu0 %v387, 48
  %v410 = vpop.permute.xlu0 %409
  %411 = vrot.lane.b32.xlu0 %v388, 48
  %v412 = vpop.permute.xlu0 %411
  %415 = vrot.lane.b32.xlu0 %v43, 96
  %v416 = vpop.permute.xlu0 %415
  %417 = vrot.lane.b32.xlu0 %v44, 96
  %v418 = vpop.permute.xlu0 %417
  %vm421 = vcmask 130048
  %v422 = vsel %vm421, %v398, 0
  %v424 = vsel %vm421, %v400, 0
  %v426 = vsel %vm421, %v402, 0
  %v428 = vsel %vm421, %v404, 0
  %v430 = vsel %vm421, %v406, 0
  %v432 = vsel %vm421, %v408, 0
  %v434 = vsel %vm421, %v410, 0
  %v436 = vsel %vm421, %v412, 0
  %438 = vmatprep.subr.mxu0 0.0
  %439 = vmatpush1.msra.mxu0 0.0
  %440 = vmatprep.subr.mxu0 0.0
  %441 = vmatpush1.msra.mxu0 0.0
  %442 = vmatprep.subr.mxu0 0.0
  %443 = vmatpush1.msra.mxu0 0.0
  %444 = vmatprep.subr.mxu0 0.0
  %445 = vmatpush1.msra.mxu0 0.0
  %446 = vmatprep.subr.mxu0 0.0
  %447 = vmatpush1.msra.mxu0 0.0
  %448 = vmatprep.subr.mxu0 0.0
  %449 = vmatpush1.msra.mxu0 0.0
  %450 = vmatprep.subr.mxu0 0.0
  %451 = vmatpush1.msra.mxu0 0.0
  %452 = vmatprep.subr.mxu0 0.0
  %453 = vmatpush1.msra.mxu0 0.0
  %454 = vmatprep.subr.mxu0 0.0
  %455 = vmatpush1.msra.mxu0 0.0
  %456 = vmatprep.subr.mxu0 0.0
  %457 = vmatpush1.msra.mxu0 0.0
  %458 = vmatprep.subr.mxu0 0.0
  %459 = vmatpush1.msra.mxu0 0.0
  %460 = vmatprep.subr.mxu0 0.0
  %461 = vmatpush1.msra.mxu0 0.0
  %462 = vmatprep.subr.mxu0 0.0
  %463 = vmatpush1.msra.mxu0 0.0
  %464 = vmatprep.subr.mxu0 0.0
  %465 = vmatpush1.msra.mxu0 0.0
  %466 = vmatprep.subr.mxu0 0.0
  %467 = vmatpush1.msra.mxu0 %v418
  %468 = vmatprep.subr.mxu0 0.0
  %469 = vmatpush1.msra.mxu0 %v416
  %470 = vmatprep.subr.mxu0 0.0
  %471 = vmatpush2.msra.mxu0 0.0
  %472 = vmatprep.subr.mxu0 0.0
  %473 = vmatpush2.msra.mxu0 0.0
  %474 = vmatprep.subr.mxu0 0.0
  %475 = vmatpush2.msra.mxu0 0.0
  %476 = vmatprep.subr.mxu0 0.0
  %477 = vmatpush2.msra.mxu0 0.0
  %478 = vmatprep.subr.mxu0 0.0
  %479 = vmatpush2.msra.mxu0 0.0
  %480 = vmatprep.subr.mxu0 0.0
  %481 = vmatpush2.msra.mxu0 0.0
  %482 = vmatprep.subr.mxu0 0.0
  %483 = vmatpush2.msra.mxu0 0.0
  %484 = vmatprep.subr.mxu0 0.0
  %485 = vmatpush2.msra.mxu0 0.0
  %486 = vmatprep.subr.mxu0 0.0
  %487 = vmatpush2.msra.mxu0 0.0
  %488 = vmatprep.subr.mxu0 0.0
  %489 = vmatpush2.msra.mxu0 0.0
  %490 = vmatprep.subr.mxu0 0.0
  %491 = vmatpush2.msra.mxu0 0.0
  %492 = vmatprep.subr.mxu0 0.0
  %493 = vmatpush2.msra.mxu0 0.0
  %494 = vmatprep.subr.mxu0 0.0
  %495 = vmatpush2.msra.mxu0 0.0
  %496 = vmatprep.subr.mxu0 0.0
  %497 = vmatpush2.msra.mxu0 0.0
  %498 = vmatprep.subr.mxu0 0.0
  %499 = vmatpush2.msra.mxu0 0.0
  %500 = vmatprep.subr.mxu0 0.0
  %501 = vmatpush2.msra.mxu0 0.0
  %502 = vmatprep.mubr.f32.mxu0 0.0
  %503 = vmatmul.mubr.f32.gmra.mxu0 %v422
  %v504 = vpop.f32.mrf.mxu0
  %v505 = vadd.f32 0.0, %v504
  %v506 = vpop.f32.mrf.mxu0
  %507 = vmatprep.mubr.f32.mxu0 0.0
  %508 = vmatmul.mubr.f32.gmra.mxu0 %v424
  %v509 = vpop.f32.mrf.mxu0
  %v510 = vadd.f32 0.0, %v509
  %v511 = vpop.f32.mrf.mxu0
  %512 = vmatprep.mubr.f32.mxu0 0.0
  %513 = vmatmul.mubr.f32.gmra.mxu0 %v426
  %v514 = vpop.f32.mrf.mxu0
  %v515 = vadd.f32 0.0, %v514
  %v516 = vpop.f32.mrf.mxu0
  %517 = vmatprep.mubr.f32.mxu0 0.0
  %518 = vmatmul.mubr.f32.gmra.mxu0 %v428
  %v519 = vpop.f32.mrf.mxu0
  %v520 = vadd.f32 0.0, %v519
  %v521 = vpop.f32.mrf.mxu0
  %522 = vmatprep.mubr.f32.mxu0 0.0
  %523 = vmatmul.mubr.f32.gmra.mxu0 %v430
  %v524 = vpop.f32.mrf.mxu0
  %v525 = vadd.f32 0.0, %v524
  %v526 = vpop.f32.mrf.mxu0
  %527 = vmatprep.mubr.f32.mxu0 0.0
  %528 = vmatmul.mubr.f32.gmra.mxu0 %v432
  %v529 = vpop.f32.mrf.mxu0
  %v530 = vadd.f32 0.0, %v529
  %v531 = vpop.f32.mrf.mxu0
  %532 = vmatprep.mubr.f32.mxu0 0.0
  %533 = vmatmul.mubr.f32.gmra.mxu0 %v434
  %v534 = vpop.f32.mrf.mxu0
  %v535 = vadd.f32 0.0, %v534
  %v536 = vpop.f32.mrf.mxu0
  %537 = vmatprep.mubr.f32.mxu0 0.0
  %538 = vmatmul.mubr.f32.gmra.mxu0 %v436
  %v539 = vpop.f32.mrf.mxu0
  %v540 = vadd.f32 0.0, %v539
  %v541 = vpop.f32.mrf.mxu0
  %542 = vdwg.mxu0
  %vm543 = vcmask 261120
  %v544 = vsel %vm543, %v505, 0.0
  %v545 = vsel %vm543, %v510, 0.0
  %v546 = vadd.f32 %v544, %v545
  %v547 = vsel %vm543, %v515, 0.0
  %v548 = vadd.f32 %v546, %v547
  %v549 = vsel %vm543, %v520, 0.0
  %v550 = vadd.f32 %v548, %v549
  %v551 = vsel %vm543, %v525, 0.0
  %v552 = vadd.f32 %v550, %v551
  %v553 = vsel %vm543, %v530, 0.0
  %v554 = vadd.f32 %v552, %v553
  %v555 = vsel %vm543, %v535, 0.0
  %v556 = vadd.f32 %v554, %v555
  %v557 = vsel %vm543, %v540, 0.0
  %v558 = vadd.f32 %v556, %v557
  %v559 = vrot.slane %v558, 4
  %v560 = vadd.f32 %v558, %v559
  %v561 = vrot.slane %v560, 2
  %v562 = vadd.f32 %v560, %v561
  %v563 = vrot.slane %v562, 1
  %v564 = vadd.f32 %v562, %v563
  %v565 = vmul.f32 %v564, 0.015625
  %v566 = vsub.f32 %v505, %v565
  %v567 = vsub.f32 %v510, %v565
  %v568 = vsub.f32 %v515, %v565
  %v569 = vsub.f32 %v520, %v565
  %v570 = vsub.f32 %v525, %v565
  %v571 = vsub.f32 %v530, %v565
  %v572 = vsub.f32 %v535, %v565
  %v573 = vsub.f32 %v540, %v565
  %v574 = vmul.f32 %v566, %v566
  %v575 = vmul.f32 %v567, %v567
  %v576 = vmul.f32 %v568, %v568
  %v577 = vmul.f32 %v569, %v569
  %v578 = vmul.f32 %v570, %v570
  %v579 = vmul.f32 %v571, %v571
  %v580 = vmul.f32 %v572, %v572
  %v581 = vmul.f32 %v573, %v573
  %v582 = vsel %vm543, %v574, 0.0
  %v583 = vsel %vm543, %v575, 0.0
  %v584 = vadd.f32 %v582, %v583
  %v585 = vsel %vm543, %v576, 0.0
  %v586 = vadd.f32 %v584, %v585
  %v587 = vsel %vm543, %v577, 0.0
  %v588 = vadd.f32 %v586, %v587
  %v589 = vsel %vm543, %v578, 0.0
  %v590 = vadd.f32 %v588, %v589
  %v591 = vsel %vm543, %v579, 0.0
  %v592 = vadd.f32 %v590, %v591
  %v593 = vsel %vm543, %v580, 0.0
  %v594 = vadd.f32 %v592, %v593
  %v595 = vsel %vm543, %v581, 0.0
  %v596 = vadd.f32 %v594, %v595
  %v597 = vrot.slane %v596, 4
  %v598 = vadd.f32 %v596, %v597
  %v599 = vrot.slane %v598, 2
  %v600 = vadd.f32 %v598, %v599
  %v601 = vrot.slane %v600, 1
  %v602 = vadd.f32 %v600, %v601
  %v603 = vmul.f32 %v602, 0.015625
  %v604 = vadd.f32 %v603, 1e-05
  %v605 = vrsqrt.pop %v604
  %v606 = vmul.f32 %v566, %v605
  %v607 = vmul.f32 %v567, %v605
  %v608 = vmul.f32 %v568, %v605
  %v609 = vmul.f32 %v569, %v605
  %v610 = vmul.f32 %v570, %v605
  %v611 = vmul.f32 %v571, %v605
  %v612 = vmul.f32 %v572, %v605
  %v613 = vmul.f32 %v573, %v605
  %v614 = vlaneseq
  %v615 = vshrl.u32 %v614, 7
  %v616 = vsub.s32 0, %v615
  %v617 = vrot.slane %v52, %v616
  %619 = vrot.lane.b32.xlu0 %v617, 96
  %v620 = vpop.permute.xlu0 %619
  %v622 = vmul.f32 %v606, %v620
  %v623 = vmul.f32 %v607, %v620
  %v624 = vmul.f32 %v608, %v620
  %v625 = vmul.f32 %v609, %v620
  %v626 = vmul.f32 %v610, %v620
  %v627 = vmul.f32 %v611, %v620
  %v628 = vmul.f32 %v612, %v620
  %v629 = vmul.f32 %v613, %v620
  %v630 = vlaneseq
  %v631 = vshrl.u32 %v630, 7
  %v632 = vsub.s32 0, %v631
  %v633 = vrot.slane %v53, %v632
  %635 = vrot.lane.b32.xlu0 %v633, 96
  %v636 = vpop.permute.xlu0 %635
  %v638 = vadd.f32 %v622, %v636
  %v639 = vadd.f32 %v623, %v636
  %v640 = vadd.f32 %v624, %v636
  %v641 = vadd.f32 %v625, %v636
  %v642 = vadd.f32 %v626, %v636
  %v643 = vadd.f32 %v627, %v636
  %v644 = vadd.f32 %v628, %v636
  %v645 = vadd.f32 %v629, %v636
  %v646 = vmax.f32 %v638, 0.0
  %v647 = vmax.f32 %v639, 0.0
  %v648 = vmax.f32 %v640, 0.0
  %v649 = vmax.f32 %v641, 0.0
  %v650 = vmax.f32 %v642, 0.0
  %v651 = vmax.f32 %v643, 0.0
  %v652 = vmax.f32 %v644, 0.0
  %v653 = vmax.f32 %v645, 0.0
  %655 = vrot.lane.b32.xlu0 %v49, 96
  %v656 = vpop.permute.xlu0 %655
  %v658 = vsel %vm113, %v33, 0
  %v661 = vsel %vm113, %v34, 0
  %v664 = vsel %vm113, %v35, 0
  %v667 = vsel %vm113, %v36, 0
  %v670 = vsel %vm113, %v37, 0
  %v673 = vsel %vm113, %v38, 0
  %v676 = vsel %vm113, %v39, 0
  %v679 = vsel %vm113, %v40, 0
  %v681 = vsel %vm138, %v656, 0
  %683 = vmatprep.subr.mxu0 0.0
  %684 = vmatpush1.msra.mxu0 0.0
  %685 = vmatprep.subr.mxu0 0.0
  %686 = vmatpush1.msra.mxu0 0.0
  %687 = vmatprep.subr.mxu0 0.0
  %688 = vmatpush1.msra.mxu0 0.0
  %689 = vmatprep.subr.mxu0 0.0
  %690 = vmatpush1.msra.mxu0 0.0
  %691 = vmatprep.subr.mxu0 0.0
  %692 = vmatpush1.msra.mxu0 0.0
  %693 = vmatprep.subr.mxu0 0.0
  %694 = vmatpush1.msra.mxu0 0.0
  %695 = vmatprep.subr.mxu0 0.0
  %696 = vmatpush1.msra.mxu0 0.0
  %697 = vmatprep.subr.mxu0 0.0
  %698 = vmatpush1.msra.mxu0 0.0
  %699 = vmatprep.subr.mxu0 0.0
  %700 = vmatpush1.msra.mxu0 0.0
  %701 = vmatprep.subr.mxu0 0.0
  %702 = vmatpush1.msra.mxu0 0.0
  %703 = vmatprep.subr.mxu0 0.0
  %704 = vmatpush1.msra.mxu0 0.0
  %705 = vmatprep.subr.mxu0 0.0
  %706 = vmatpush1.msra.mxu0 0.0
  %707 = vmatprep.subr.mxu0 0.0
  %708 = vmatpush1.msra.mxu0 0.0
  %709 = vmatprep.subr.mxu0 0.0
  %710 = vmatpush1.msra.mxu0 0.0
  %711 = vmatprep.subr.mxu0 0.0
  %712 = vmatpush1.msra.mxu0 0.0
  %713 = vmatprep.subr.mxu0 0.0
  %714 = vmatpush1.msra.mxu0 %v681
  %715 = vmatprep.subr.mxu0 0.0
  %716 = vmatpush2.msra.mxu0 0.0
  %717 = vmatprep.subr.mxu0 0.0
  %718 = vmatpush2.msra.mxu0 0.0
  %719 = vmatprep.subr.mxu0 0.0
  %720 = vmatpush2.msra.mxu0 0.0
  %721 = vmatprep.subr.mxu0 0.0
  %722 = vmatpush2.msra.mxu0 0.0
  %723 = vmatprep.subr.mxu0 0.0
  %724 = vmatpush2.msra.mxu0 0.0
  %725 = vmatprep.subr.mxu0 0.0
  %726 = vmatpush2.msra.mxu0 0.0
  %727 = vmatprep.subr.mxu0 0.0
  %728 = vmatpush2.msra.mxu0 0.0
  %729 = vmatprep.subr.mxu0 0.0
  %730 = vmatpush2.msra.mxu0 0.0
  %731 = vmatprep.subr.mxu0 0.0
  %732 = vmatpush2.msra.mxu0 0.0
  %733 = vmatprep.subr.mxu0 0.0
  %734 = vmatpush2.msra.mxu0 0.0
  %735 = vmatprep.subr.mxu0 0.0
  %736 = vmatpush2.msra.mxu0 0.0
  %737 = vmatprep.subr.mxu0 0.0
  %738 = vmatpush2.msra.mxu0 0.0
  %739 = vmatprep.subr.mxu0 0.0
  %740 = vmatpush2.msra.mxu0 0.0
  %741 = vmatprep.subr.mxu0 0.0
  %742 = vmatpush2.msra.mxu0 0.0
  %743 = vmatprep.subr.mxu0 0.0
  %744 = vmatpush2.msra.mxu0 0.0
  %745 = vmatprep.subr.mxu0 0.0
  %746 = vmatpush2.msra.mxu0 0.0
  %747 = vmatprep.mubr.f32.mxu0 0.0
  %748 = vmatmul.mubr.f32.gmra.mxu0 %v658
  %v749 = vpop.f32.mrf.mxu0
  %v750 = vadd.f32 0.0, %v749
  %v751 = vpop.f32.mrf.mxu0
  %752 = vmatprep.mubr.f32.mxu0 0.0
  %753 = vmatmul.mubr.f32.gmra.mxu0 %v661
  %v754 = vpop.f32.mrf.mxu0
  %v755 = vadd.f32 0.0, %v754
  %v756 = vpop.f32.mrf.mxu0
  %757 = vmatprep.mubr.f32.mxu0 0.0
  %758 = vmatmul.mubr.f32.gmra.mxu0 %v664
  %v759 = vpop.f32.mrf.mxu0
  %v760 = vadd.f32 0.0, %v759
  %v761 = vpop.f32.mrf.mxu0
  %762 = vmatprep.mubr.f32.mxu0 0.0
  %763 = vmatmul.mubr.f32.gmra.mxu0 %v667
  %v764 = vpop.f32.mrf.mxu0
  %v765 = vadd.f32 0.0, %v764
  %v766 = vpop.f32.mrf.mxu0
  %767 = vmatprep.mubr.f32.mxu0 0.0
  %768 = vmatmul.mubr.f32.gmra.mxu0 %v670
  %v769 = vpop.f32.mrf.mxu0
  %v770 = vadd.f32 0.0, %v769
  %v771 = vpop.f32.mrf.mxu0
  %772 = vmatprep.mubr.f32.mxu0 0.0
  %773 = vmatmul.mubr.f32.gmra.mxu0 %v673
  %v774 = vpop.f32.mrf.mxu0
  %v775 = vadd.f32 0.0, %v774
  %v776 = vpop.f32.mrf.mxu0
  %777 = vmatprep.mubr.f32.mxu0 0.0
  %778 = vmatmul.mubr.f32.gmra.mxu0 %v676
  %v779 = vpop.f32.mrf.mxu0
  %v780 = vadd.f32 0.0, %v779
  %v781 = vpop.f32.mrf.mxu0
  %782 = vmatprep.mubr.f32.mxu0 0.0
  %783 = vmatmul.mubr.f32.gmra.mxu0 %v679
  %v784 = vpop.f32.mrf.mxu0
  %v785 = vadd.f32 0.0, %v784
  %v786 = vpop.f32.mrf.mxu0
  %787 = vdwg.mxu0
  %v789 = vsel %vm543, %v646, 0
  %v792 = vsel %vm543, %v647, 0
  %v795 = vsel %vm543, %v648, 0
  %v798 = vsel %vm543, %v649, 0
  %v801 = vsel %vm543, %v650, 0
  %v804 = vsel %vm543, %v651, 0
  %v807 = vsel %vm543, %v652, 0
  %v810 = vsel %vm543, %v653, 0
  %812 = vmatprep.subr.mxu0 0.0
  %813 = vmatpush1.msra.mxu0 0.0
  %814 = vmatprep.subr.mxu0 0.0
  %815 = vmatpush1.msra.mxu0 0.0
  %816 = vmatprep.subr.mxu0 0.0
  %817 = vmatpush1.msra.mxu0 0.0
  %818 = vmatprep.subr.mxu0 0.0
  %819 = vmatpush1.msra.mxu0 0.0
  %820 = vmatprep.subr.mxu0 0.0
  %821 = vmatpush1.msra.mxu0 0.0
  %822 = vmatprep.subr.mxu0 0.0
  %823 = vmatpush1.msra.mxu0 0.0
  %824 = vmatprep.subr.mxu0 0.0
  %825 = vmatpush1.msra.mxu0 0.0
  %826 = vmatprep.subr.mxu0 0.0
  %827 = vmatpush1.msra.mxu0 0.0
  %828 = vmatprep.subr.mxu0 0.0
  %829 = vmatpush1.msra.mxu0 0.0
  %830 = vmatprep.subr.mxu0 0.0
  %831 = vmatpush1.msra.mxu0 0.0
  %832 = vmatprep.subr.mxu0 0.0
  %833 = vmatpush1.msra.mxu0 0.0
  %834 = vmatprep.subr.mxu0 0.0
  %835 = vmatpush1.msra.mxu0 0.0
  %836 = vmatprep.subr.mxu0 0.0
  %837 = vmatpush1.msra.mxu0 %v48
  %838 = vmatprep.subr.mxu0 0.0
  %839 = vmatpush1.msra.mxu0 %v47
  %840 = vmatprep.subr.mxu0 0.0
  %841 = vmatpush1.msra.mxu0 %v46
  %842 = vmatprep.subr.mxu0 0.0
  %843 = vmatpush1.msra.mxu0 %v45
  %844 = vmatprep.subr.mxu0 0.0
  %845 = vmatpush2.msra.mxu0 0.0
  %846 = vmatprep.subr.mxu0 0.0
  %847 = vmatpush2.msra.mxu0 0.0
  %848 = vmatprep.subr.mxu0 0.0
  %849 = vmatpush2.msra.mxu0 0.0
  %850 = vmatprep.subr.mxu0 0.0
  %851 = vmatpush2.msra.mxu0 0.0
  %852 = vmatprep.subr.mxu0 0.0
  %853 = vmatpush2.msra.mxu0 0.0
  %854 = vmatprep.subr.mxu0 0.0
  %855 = vmatpush2.msra.mxu0 0.0
  %856 = vmatprep.subr.mxu0 0.0
  %857 = vmatpush2.msra.mxu0 0.0
  %858 = vmatprep.subr.mxu0 0.0
  %859 = vmatpush2.msra.mxu0 0.0
  %860 = vmatprep.subr.mxu0 0.0
  %861 = vmatpush2.msra.mxu0 0.0
  %862 = vmatprep.subr.mxu0 0.0
  %863 = vmatpush2.msra.mxu0 0.0
  %864 = vmatprep.subr.mxu0 0.0
  %865 = vmatpush2.msra.mxu0 0.0
  %866 = vmatprep.subr.mxu0 0.0
  %867 = vmatpush2.msra.mxu0 0.0
  %868 = vmatprep.subr.mxu0 0.0
  %869 = vmatpush2.msra.mxu0 0.0
  %870 = vmatprep.subr.mxu0 0.0
  %871 = vmatpush2.msra.mxu0 0.0
  %872 = vmatprep.subr.mxu0 0.0
  %873 = vmatpush2.msra.mxu0 0.0
  %874 = vmatprep.subr.mxu0 0.0
  %875 = vmatpush2.msra.mxu0 0.0
  %876 = vmatprep.mubr.f32.mxu0 0.0
  %877 = vmatmul.mubr.f32.gmra.mxu0 %v789
  %v878 = vpop.f32.mrf.mxu0
  %v879 = vadd.f32 %v750, %v878
  %v880 = vpop.f32.mrf.mxu0
  %881 = vmatprep.mubr.f32.mxu0 0.0
  %882 = vmatmul.mubr.f32.gmra.mxu0 %v792
  %v883 = vpop.f32.mrf.mxu0
  %v884 = vadd.f32 %v755, %v883
  %v885 = vpop.f32.mrf.mxu0
  %886 = vmatprep.mubr.f32.mxu0 0.0
  %887 = vmatmul.mubr.f32.gmra.mxu0 %v795
  %v888 = vpop.f32.mrf.mxu0
  %v889 = vadd.f32 %v760, %v888
  %v890 = vpop.f32.mrf.mxu0
  %891 = vmatprep.mubr.f32.mxu0 0.0
  %892 = vmatmul.mubr.f32.gmra.mxu0 %v798
  %v893 = vpop.f32.mrf.mxu0
  %v894 = vadd.f32 %v765, %v893
  %v895 = vpop.f32.mrf.mxu0
  %896 = vmatprep.mubr.f32.mxu0 0.0
  %897 = vmatmul.mubr.f32.gmra.mxu0 %v801
  %v898 = vpop.f32.mrf.mxu0
  %v899 = vadd.f32 %v770, %v898
  %v900 = vpop.f32.mrf.mxu0
  %901 = vmatprep.mubr.f32.mxu0 0.0
  %902 = vmatmul.mubr.f32.gmra.mxu0 %v804
  %v903 = vpop.f32.mrf.mxu0
  %v904 = vadd.f32 %v775, %v903
  %v905 = vpop.f32.mrf.mxu0
  %906 = vmatprep.mubr.f32.mxu0 0.0
  %907 = vmatmul.mubr.f32.gmra.mxu0 %v807
  %v908 = vpop.f32.mrf.mxu0
  %v909 = vadd.f32 %v780, %v908
  %v910 = vpop.f32.mrf.mxu0
  %911 = vmatprep.mubr.f32.mxu0 0.0
  %912 = vmatmul.mubr.f32.gmra.mxu0 %v810
  %v913 = vpop.f32.mrf.mxu0
  %v914 = vadd.f32 %v785, %v913
  %v915 = vpop.f32.mrf.mxu0
  %916 = vdwg.mxu0
  %v917 = vsel %vm543, %v879, 0.0
  %v918 = vsel %vm543, %v884, 0.0
  %v919 = vadd.f32 %v917, %v918
  %v920 = vsel %vm543, %v889, 0.0
  %v921 = vadd.f32 %v919, %v920
  %v922 = vsel %vm543, %v894, 0.0
  %v923 = vadd.f32 %v921, %v922
  %v924 = vsel %vm543, %v899, 0.0
  %v925 = vadd.f32 %v923, %v924
  %v926 = vsel %vm543, %v904, 0.0
  %v927 = vadd.f32 %v925, %v926
  %v928 = vsel %vm543, %v909, 0.0
  %v929 = vadd.f32 %v927, %v928
  %v930 = vsel %vm543, %v914, 0.0
  %v931 = vadd.f32 %v929, %v930
  %v932 = vrot.slane %v931, 4
  %v933 = vadd.f32 %v931, %v932
  %v934 = vrot.slane %v933, 2
  %v935 = vadd.f32 %v933, %v934
  %v936 = vrot.slane %v935, 1
  %v937 = vadd.f32 %v935, %v936
  %v938 = vmul.f32 %v937, 0.015625
  %v939 = vsub.f32 %v879, %v938
  %v940 = vsub.f32 %v884, %v938
  %v941 = vsub.f32 %v889, %v938
  %v942 = vsub.f32 %v894, %v938
  %v943 = vsub.f32 %v899, %v938
  %v944 = vsub.f32 %v904, %v938
  %v945 = vsub.f32 %v909, %v938
  %v946 = vsub.f32 %v914, %v938
  %v947 = vmul.f32 %v939, %v939
  %v948 = vmul.f32 %v940, %v940
  %v949 = vmul.f32 %v941, %v941
  %v950 = vmul.f32 %v942, %v942
  %v951 = vmul.f32 %v943, %v943
  %v952 = vmul.f32 %v944, %v944
  %v953 = vmul.f32 %v945, %v945
  %v954 = vmul.f32 %v946, %v946
  %v955 = vsel %vm543, %v947, 0.0
  %v956 = vsel %vm543, %v948, 0.0
  %v957 = vadd.f32 %v955, %v956
  %v958 = vsel %vm543, %v949, 0.0
  %v959 = vadd.f32 %v957, %v958
  %v960 = vsel %vm543, %v950, 0.0
  %v961 = vadd.f32 %v959, %v960
  %v962 = vsel %vm543, %v951, 0.0
  %v963 = vadd.f32 %v961, %v962
  %v964 = vsel %vm543, %v952, 0.0
  %v965 = vadd.f32 %v963, %v964
  %v966 = vsel %vm543, %v953, 0.0
  %v967 = vadd.f32 %v965, %v966
  %v968 = vsel %vm543, %v954, 0.0
  %v969 = vadd.f32 %v967, %v968
  %v970 = vrot.slane %v969, 4
  %v971 = vadd.f32 %v969, %v970
  %v972 = vrot.slane %v971, 2
  %v973 = vadd.f32 %v971, %v972
  %v974 = vrot.slane %v973, 1
  %v975 = vadd.f32 %v973, %v974
  %v976 = vmul.f32 %v975, 0.015625
  %v977 = vadd.f32 %v976, 1e-05
  %v978 = vrsqrt.pop %v977
  %v979 = vmul.f32 %v939, %v978
  %v980 = vmul.f32 %v940, %v978
  %v981 = vmul.f32 %v941, %v978
  %v982 = vmul.f32 %v942, %v978
  %v983 = vmul.f32 %v943, %v978
  %v984 = vmul.f32 %v944, %v978
  %v985 = vmul.f32 %v945, %v978
  %v986 = vmul.f32 %v946, %v978
  %v987 = vlaneseq
  %v988 = vshrl.u32 %v987, 7
  %v989 = vsub.s32 0, %v988
  %v990 = vrot.slane %v54, %v989
  %992 = vrot.lane.b32.xlu0 %v990, 96
  %v993 = vpop.permute.xlu0 %992
  %v995 = vmul.f32 %v979, %v993
  %v996 = vmul.f32 %v980, %v993
  %v997 = vmul.f32 %v981, %v993
  %v998 = vmul.f32 %v982, %v993
  %v999 = vmul.f32 %v983, %v993
  %v1000 = vmul.f32 %v984, %v993
  %v1001 = vmul.f32 %v985, %v993
  %v1002 = vmul.f32 %v986, %v993
  %v1003 = vlaneseq
  %v1004 = vshrl.u32 %v1003, 7
  %v1005 = vsub.s32 0, %v1004
  %v1006 = vrot.slane %v55, %v1005
  %1008 = vrot.lane.b32.xlu0 %v1006, 96
  %v1009 = vpop.permute.xlu0 %1008
  %v1011 = vadd.f32 %v995, %v1009
  %v1012 = vadd.f32 %v996, %v1009
  %v1013 = vadd.f32 %v997, %v1009
  %v1014 = vadd.f32 %v998, %v1009
  %v1015 = vadd.f32 %v999, %v1009
  %v1016 = vadd.f32 %v1000, %v1009
  %v1017 = vadd.f32 %v1001, %v1009
  %v1018 = vadd.f32 %v1002, %v1009
  %v1019 = vmax.f32 %v1011, 0.0
  %v1020 = vmax.f32 %v1012, 0.0
  %v1021 = vmax.f32 %v1013, 0.0
  %v1022 = vmax.f32 %v1014, 0.0
  %v1023 = vmax.f32 %v1015, 0.0
  %v1024 = vmax.f32 %v1016, 0.0
  %v1025 = vmax.f32 %v1017, 0.0
  %v1026 = vmax.f32 %v1018, 0.0
  %1031 = vrot.lane.b32.xlu0 %v45, 64
  %v1032 = vpop.permute.xlu0 %1031
  %1033 = vrot.lane.b32.xlu0 %v46, 64
  %v1034 = vpop.permute.xlu0 %1033
  %1035 = vrot.lane.b32.xlu0 %v47, 64
  %v1036 = vpop.permute.xlu0 %1035
  %1037 = vrot.lane.b32.xlu0 %v48, 64
  %v1038 = vpop.permute.xlu0 %1037
  %v1044 = vsel %vm543, %v1019, 0
  %v1047 = vsel %vm543, %v1020, 0
  %v1050 = vsel %vm543, %v1021, 0
  %v1053 = vsel %vm543, %v1022, 0
  %v1056 = vsel %vm543, %v1023, 0
  %v1059 = vsel %vm543, %v1024, 0
  %v1062 = vsel %vm543, %v1025, 0
  %v1065 = vsel %vm543, %v1026, 0
  %1067 = vmatprep.subr.mxu0 0.0
  %1068 = vmatpush1.msra.mxu0 0.0
  %1069 = vmatprep.subr.mxu0 0.0
  %1070 = vmatpush1.msra.mxu0 0.0
  %1071 = vmatprep.subr.mxu0 0.0
  %1072 = vmatpush1.msra.mxu0 0.0
  %1073 = vmatprep.subr.mxu0 0.0
  %1074 = vmatpush1.msra.mxu0 0.0
  %1075 = vmatprep.subr.mxu0 0.0
  %1076 = vmatpush1.msra.mxu0 0.0
  %1077 = vmatprep.subr.mxu0 0.0
  %1078 = vmatpush1.msra.mxu0 0.0
  %1079 = vmatprep.subr.mxu0 0.0
  %1080 = vmatpush1.msra.mxu0 0.0
  %1081 = vmatprep.subr.mxu0 0.0
  %1082 = vmatpush1.msra.mxu0 0.0
  %1083 = vmatprep.subr.mxu0 0.0
  %1084 = vmatpush1.msra.mxu0 0.0
  %1085 = vmatprep.subr.mxu0 0.0
  %1086 = vmatpush1.msra.mxu0 0.0
  %1087 = vmatprep.subr.mxu0 0.0
  %1088 = vmatpush1.msra.mxu0 0.0
  %1089 = vmatprep.subr.mxu0 0.0
  %1090 = vmatpush1.msra.mxu0 0.0
  %1091 = vmatprep.subr.mxu0 0.0
  %1092 = vmatpush1.msra.mxu0 %v1038
  %1093 = vmatprep.subr.mxu0 0.0
  %1094 = vmatpush1.msra.mxu0 %v1036
  %1095 = vmatprep.subr.mxu0 0.0
  %1096 = vmatpush1.msra.mxu0 %v1034
  %1097 = vmatprep.subr.mxu0 0.0
  %1098 = vmatpush1.msra.mxu0 %v1032
  %1099 = vmatprep.subr.mxu0 0.0
  %1100 = vmatpush2.msra.mxu0 0.0
  %1101 = vmatprep.subr.mxu0 0.0
  %1102 = vmatpush2.msra.mxu0 0.0
  %1103 = vmatprep.subr.mxu0 0.0
  %1104 = vmatpush2.msra.mxu0 0.0
  %1105 = vmatprep.subr.mxu0 0.0
  %1106 = vmatpush2.msra.mxu0 0.0
  %1107 = vmatprep.subr.mxu0 0.0
  %1108 = vmatpush2.msra.mxu0 0.0
  %1109 = vmatprep.subr.mxu0 0.0
  %1110 = vmatpush2.msra.mxu0 0.0
  %1111 = vmatprep.subr.mxu0 0.0
  %1112 = vmatpush2.msra.mxu0 0.0
  %1113 = vmatprep.subr.mxu0 0.0
  %1114 = vmatpush2.msra.mxu0 0.0
  %1115 = vmatprep.subr.mxu0 0.0
  %1116 = vmatpush2.msra.mxu0 0.0
  %1117 = vmatprep.subr.mxu0 0.0
  %1118 = vmatpush2.msra.mxu0 0.0
  %1119 = vmatprep.subr.mxu0 0.0
  %1120 = vmatpush2.msra.mxu0 0.0
  %1121 = vmatprep.subr.mxu0 0.0
  %1122 = vmatpush2.msra.mxu0 0.0
  %1123 = vmatprep.subr.mxu0 0.0
  %1124 = vmatpush2.msra.mxu0 0.0
  %1125 = vmatprep.subr.mxu0 0.0
  %1126 = vmatpush2.msra.mxu0 0.0
  %1127 = vmatprep.subr.mxu0 0.0
  %1128 = vmatpush2.msra.mxu0 0.0
  %1129 = vmatprep.subr.mxu0 0.0
  %1130 = vmatpush2.msra.mxu0 0.0
  %1131 = vmatprep.mubr.f32.mxu0 0.0
  %1132 = vmatmul.mubr.f32.gmra.mxu0 %v1044
  %v1133 = vpop.f32.mrf.mxu0
  %v1134 = vadd.f32 0.0, %v1133
  %v1135 = vpop.f32.mrf.mxu0
  %1136 = vmatprep.mubr.f32.mxu0 0.0
  %1137 = vmatmul.mubr.f32.gmra.mxu0 %v1047
  %v1138 = vpop.f32.mrf.mxu0
  %v1139 = vadd.f32 0.0, %v1138
  %v1140 = vpop.f32.mrf.mxu0
  %1141 = vmatprep.mubr.f32.mxu0 0.0
  %1142 = vmatmul.mubr.f32.gmra.mxu0 %v1050
  %v1143 = vpop.f32.mrf.mxu0
  %v1144 = vadd.f32 0.0, %v1143
  %v1145 = vpop.f32.mrf.mxu0
  %1146 = vmatprep.mubr.f32.mxu0 0.0
  %1147 = vmatmul.mubr.f32.gmra.mxu0 %v1053
  %v1148 = vpop.f32.mrf.mxu0
  %v1149 = vadd.f32 0.0, %v1148
  %v1150 = vpop.f32.mrf.mxu0
  %1151 = vmatprep.mubr.f32.mxu0 0.0
  %1152 = vmatmul.mubr.f32.gmra.mxu0 %v1056
  %v1153 = vpop.f32.mrf.mxu0
  %v1154 = vadd.f32 0.0, %v1153
  %v1155 = vpop.f32.mrf.mxu0
  %1156 = vmatprep.mubr.f32.mxu0 0.0
  %1157 = vmatmul.mubr.f32.gmra.mxu0 %v1059
  %v1158 = vpop.f32.mrf.mxu0
  %v1159 = vadd.f32 0.0, %v1158
  %v1160 = vpop.f32.mrf.mxu0
  %1161 = vmatprep.mubr.f32.mxu0 0.0
  %1162 = vmatmul.mubr.f32.gmra.mxu0 %v1062
  %v1163 = vpop.f32.mrf.mxu0
  %v1164 = vadd.f32 0.0, %v1163
  %v1165 = vpop.f32.mrf.mxu0
  %1166 = vmatprep.mubr.f32.mxu0 0.0
  %1167 = vmatmul.mubr.f32.gmra.mxu0 %v1065
  %v1168 = vpop.f32.mrf.mxu0
  %v1169 = vadd.f32 0.0, %v1168
  %v1170 = vpop.f32.mrf.mxu0
  %1171 = vdwg.mxu0
  %v1172 = vsel %vm421, %v1134, 0.0
  %v1173 = vsel %vm421, %v1139, 0.0
  %v1174 = vadd.f32 %v1172, %v1173
  %v1175 = vsel %vm421, %v1144, 0.0
  %v1176 = vadd.f32 %v1174, %v1175
  %v1177 = vsel %vm421, %v1149, 0.0
  %v1178 = vadd.f32 %v1176, %v1177
  %v1179 = vsel %vm421, %v1154, 0.0
  %v1180 = vadd.f32 %v1178, %v1179
  %v1181 = vsel %vm421, %v1159, 0.0
  %v1182 = vadd.f32 %v1180, %v1181
  %v1183 = vsel %vm421, %v1164, 0.0
  %v1184 = vadd.f32 %v1182, %v1183
  %v1185 = vsel %vm421, %v1169, 0.0
  %v1186 = vadd.f32 %v1184, %v1185
  %v1187 = vrot.slane %v1186, 4
  %v1188 = vadd.f32 %v1186, %v1187
  %v1189 = vrot.slane %v1188, 2
  %v1190 = vadd.f32 %v1188, %v1189
  %v1191 = vrot.slane %v1190, 1
  %v1192 = vadd.f32 %v1190, %v1191
  %v1193 = vmul.f32 %v1192, 0.015625
  %v1194 = vsub.f32 %v1134, %v1193
  %v1195 = vsub.f32 %v1139, %v1193
  %v1196 = vsub.f32 %v1144, %v1193
  %v1197 = vsub.f32 %v1149, %v1193
  %v1198 = vsub.f32 %v1154, %v1193
  %v1199 = vsub.f32 %v1159, %v1193
  %v1200 = vsub.f32 %v1164, %v1193
  %v1201 = vsub.f32 %v1169, %v1193
  %v1202 = vmul.f32 %v1194, %v1194
  %v1203 = vmul.f32 %v1195, %v1195
  %v1204 = vmul.f32 %v1196, %v1196
  %v1205 = vmul.f32 %v1197, %v1197
  %v1206 = vmul.f32 %v1198, %v1198
  %v1207 = vmul.f32 %v1199, %v1199
  %v1208 = vmul.f32 %v1200, %v1200
  %v1209 = vmul.f32 %v1201, %v1201
  %v1210 = vsel %vm421, %v1202, 0.0
  %v1211 = vsel %vm421, %v1203, 0.0
  %v1212 = vadd.f32 %v1210, %v1211
  %v1213 = vsel %vm421, %v1204, 0.0
  %v1214 = vadd.f32 %v1212, %v1213
  %v1215 = vsel %vm421, %v1205, 0.0
  %v1216 = vadd.f32 %v1214, %v1215
  %v1217 = vsel %vm421, %v1206, 0.0
  %v1218 = vadd.f32 %v1216, %v1217
  %v1219 = vsel %vm421, %v1207, 0.0
  %v1220 = vadd.f32 %v1218, %v1219
  %v1221 = vsel %vm421, %v1208, 0.0
  %v1222 = vadd.f32 %v1220, %v1221
  %v1223 = vsel %vm421, %v1209, 0.0
  %v1224 = vadd.f32 %v1222, %v1223
  %v1225 = vrot.slane %v1224, 4
  %v1226 = vadd.f32 %v1224, %v1225
  %v1227 = vrot.slane %v1226, 2
  %v1228 = vadd.f32 %v1226, %v1227
  %v1229 = vrot.slane %v1228, 1
  %v1230 = vadd.f32 %v1228, %v1229
  %v1231 = vmul.f32 %v1230, 0.015625
  %v1232 = vadd.f32 %v1231, 1e-05
  %v1233 = vrsqrt.pop %v1232
  %v1234 = vmul.f32 %v1194, %v1233
  %v1235 = vmul.f32 %v1195, %v1233
  %v1236 = vmul.f32 %v1196, %v1233
  %v1237 = vmul.f32 %v1197, %v1233
  %v1238 = vmul.f32 %v1198, %v1233
  %v1239 = vmul.f32 %v1199, %v1233
  %v1240 = vmul.f32 %v1200, %v1233
  %v1241 = vmul.f32 %v1201, %v1233
  %v1242 = vlaneseq
  %v1243 = vshrl.u32 %v1242, 7
  %v1244 = vsub.s32 0, %v1243
  %v1245 = vrot.slane %v56, %v1244
  %1247 = vrot.lane.b32.xlu0 %v1245, 48
  %v1248 = vpop.permute.xlu0 %1247
  %v1250 = vmul.f32 %v1234, %v1248
  %v1251 = vmul.f32 %v1235, %v1248
  %v1252 = vmul.f32 %v1236, %v1248
  %v1253 = vmul.f32 %v1237, %v1248
  %v1254 = vmul.f32 %v1238, %v1248
  %v1255 = vmul.f32 %v1239, %v1248
  %v1256 = vmul.f32 %v1240, %v1248
  %v1257 = vmul.f32 %v1241, %v1248
  %v1258 = vlaneseq
  %v1259 = vshrl.u32 %v1258, 7
  %v1260 = vsub.s32 0, %v1259
  %v1261 = vrot.slane %v57, %v1260
  %1263 = vrot.lane.b32.xlu0 %v1261, 48
  %v1264 = vpop.permute.xlu0 %1263
  %v1266 = vadd.f32 %v1250, %v1264
  %v1267 = vadd.f32 %v1251, %v1264
  %v1268 = vadd.f32 %v1252, %v1264
  %v1269 = vadd.f32 %v1253, %v1264
  %v1270 = vadd.f32 %v1254, %v1264
  %v1271 = vadd.f32 %v1255, %v1264
  %v1272 = vadd.f32 %v1256, %v1264
  %v1273 = vadd.f32 %v1257, %v1264
  %v1274 = vmax.f32 %v1266, 0.0
  %v1275 = vmax.f32 %v1267, 0.0
  %v1276 = vmax.f32 %v1268, 0.0
  %v1277 = vmax.f32 %v1269, 0.0
  %v1278 = vmax.f32 %v1270, 0.0
  %v1279 = vmax.f32 %v1271, 0.0
  %v1280 = vmax.f32 %v1272, 0.0
  %v1281 = vmax.f32 %v1273, 0.0
  %1282 = vrot.lane.b32.xlu0 %v43, 32
  %v1283 = vpop.permute.xlu0 %1282
  %1284 = vrot.lane.b32.xlu0 %v44, 32
  %v1285 = vpop.permute.xlu0 %1284
  %1289 = vrot.lane.b32.xlu0 %v360, 32
  %v1290 = vpop.permute.xlu0 %1289
  %v1293 = vsel %vm421, %v1274, 0
  %v1296 = vsel %vm421, %v1275, 0
  %v1299 = vsel %vm421, %v1276, 0
  %v1302 = vsel %vm421, %v1277, 0
  %v1305 = vsel %vm421, %v1278, 0
  %v1308 = vsel %vm421, %v1279, 0
  %v1311 = vsel %vm421, %v1280, 0
  %v1314 = vsel %vm421, %v1281, 0
  %1316 = vmatprep.subr.mxu0 0.0
  %1317 = vmatpush1.msra.mxu0 0.0
  %1318 = vmatprep.subr.mxu0 0.0
  %1319 = vmatpush1.msra.mxu0 0.0
  %1320 = vmatprep.subr.mxu0 0.0
  %1321 = vmatpush1.msra.mxu0 0.0
  %1322 = vmatprep.subr.mxu0 0.0
  %1323 = vmatpush1.msra.mxu0 0.0
  %1324 = vmatprep.subr.mxu0 0.0
  %1325 = vmatpush1.msra.mxu0 0.0
  %1326 = vmatprep.subr.mxu0 0.0
  %1327 = vmatpush1.msra.mxu0 0.0
  %1328 = vmatprep.subr.mxu0 0.0
  %1329 = vmatpush1.msra.mxu0 0.0
  %1330 = vmatprep.subr.mxu0 0.0
  %1331 = vmatpush1.msra.mxu0 0.0
  %1332 = vmatprep.subr.mxu0 0.0
  %1333 = vmatpush1.msra.mxu0 0.0
  %1334 = vmatprep.subr.mxu0 0.0
  %1335 = vmatpush1.msra.mxu0 0.0
  %1336 = vmatprep.subr.mxu0 0.0
  %1337 = vmatpush1.msra.mxu0 0.0
  %1338 = vmatprep.subr.mxu0 0.0
  %1339 = vmatpush1.msra.mxu0 0.0
  %1340 = vmatprep.subr.mxu0 0.0
  %1341 = vmatpush1.msra.mxu0 0.0
  %1342 = vmatprep.subr.mxu0 0.0
  %1343 = vmatpush1.msra.mxu0 0.0
  %1344 = vmatprep.subr.mxu0 0.0
  %1345 = vmatpush1.msra.mxu0 %v1285
  %1346 = vmatprep.subr.mxu0 0.0
  %1347 = vmatpush1.msra.mxu0 %v1283
  %1348 = vmatprep.subr.mxu0 0.0
  %1349 = vmatpush2.msra.mxu0 0.0
  %1350 = vmatprep.subr.mxu0 0.0
  %1351 = vmatpush2.msra.mxu0 0.0
  %1352 = vmatprep.subr.mxu0 0.0
  %1353 = vmatpush2.msra.mxu0 0.0
  %1354 = vmatprep.subr.mxu0 0.0
  %1355 = vmatpush2.msra.mxu0 0.0
  %1356 = vmatprep.subr.mxu0 0.0
  %1357 = vmatpush2.msra.mxu0 0.0
  %1358 = vmatprep.subr.mxu0 0.0
  %1359 = vmatpush2.msra.mxu0 0.0
  %1360 = vmatprep.subr.mxu0 0.0
  %1361 = vmatpush2.msra.mxu0 0.0
  %1362 = vmatprep.subr.mxu0 0.0
  %1363 = vmatpush2.msra.mxu0 0.0
  %1364 = vmatprep.subr.mxu0 0.0
  %1365 = vmatpush2.msra.mxu0 0.0
  %1366 = vmatprep.subr.mxu0 0.0
  %1367 = vmatpush2.msra.mxu0 0.0
  %1368 = vmatprep.subr.mxu0 0.0
  %1369 = vmatpush2.msra.mxu0 0.0
  %1370 = vmatprep.subr.mxu0 0.0
  %1371 = vmatpush2.msra.mxu0 0.0
  %1372 = vmatprep.subr.mxu0 0.0
  %1373 = vmatpush2.msra.mxu0 0.0
  %1374 = vmatprep.subr.mxu0 0.0
  %1375 = vmatpush2.msra.mxu0 0.0
  %1376 = vmatprep.subr.mxu0 0.0
  %1377 = vmatpush2.msra.mxu0 0.0
  %1378 = vmatprep.subr.mxu0 0.0
  %1379 = vmatpush2.msra.mxu0 0.0
  %1380 = vmatprep.mubr.f32.mxu0 0.0
  %1381 = vmatmul.mubr.f32.gmra.mxu0 %v1293
  %v1382 = vpop.f32.mrf.mxu0
  %v1383 = vadd.f32 %v1290, %v1382
  %v1384 = vpop.f32.mrf.mxu0
  %1385 = vmatprep.mubr.f32.mxu0 0.0
  %1386 = vmatmul.mubr.f32.gmra.mxu0 %v1296
  %v1387 = vpop.f32.mrf.mxu0
  %v1388 = vadd.f32 %v1290, %v1387
  %v1389 = vpop.f32.mrf.mxu0
  %1390 = vmatprep.mubr.f32.mxu0 0.0
  %1391 = vmatmul.mubr.f32.gmra.mxu0 %v1299
  %v1392 = vpop.f32.mrf.mxu0
  %v1393 = vadd.f32 %v1290, %v1392
  %v1394 = vpop.f32.mrf.mxu0
  %1395 = vmatprep.mubr.f32.mxu0 0.0
  %1396 = vmatmul.mubr.f32.gmra.mxu0 %v1302
  %v1397 = vpop.f32.mrf.mxu0
  %v1398 = vadd.f32 %v1290, %v1397
  %v1399 = vpop.f32.mrf.mxu0
  %1400 = vmatprep.mubr.f32.mxu0 0.0
  %1401 = vmatmul.mubr.f32.gmra.mxu0 %v1305
  %v1402 = vpop.f32.mrf.mxu0
  %v1403 = vadd.f32 %v1290, %v1402
  %v1404 = vpop.f32.mrf.mxu0
  %1405 = vmatprep.mubr.f32.mxu0 0.0
  %1406 = vmatmul.mubr.f32.gmra.mxu0 %v1308
  %v1407 = vpop.f32.mrf.mxu0
  %v1408 = vadd.f32 %v1290, %v1407
  %v1409 = vpop.f32.mrf.mxu0
  %1410 = vmatprep.mubr.f32.mxu0 0.0
  %1411 = vmatmul.mubr.f32.gmra.mxu0 %v1311
  %v1412 = vpop.f32.mrf.mxu0
  %v1413 = vadd.f32 %v1290, %v1412
  %v1414 = vpop.f32.mrf.mxu0
  %1415 = vmatprep.mubr.f32.mxu0 0.0
  %1416 = vmatmul.mubr.f32.gmra.mxu0 %v1314
  %v1417 = vpop.f32.mrf.mxu0
  %v1418 = vadd.f32 %v1290, %v1417
  %v1419 = vpop.f32.mrf.mxu0
  %1420 = vdwg.mxu0
  %vm1421 = vcmask 7168
  %1422 = vst.msk [vmem:[%s4] sm:$0xff] %vm1421, %v1383
  %1423 = vst.msk [vmem:[%s4 + $0x8] sm:$0xff] %vm1421, %v1388
  %1424 = vst.msk [vmem:[%s4 + $0x10] sm:$0xff] %vm1421, %v1393
  %1425 = vst.msk [vmem:[%s4 + $0x18] sm:$0xff] %vm1421, %v1398
  %1426 = vst.msk [vmem:[%s4 + $0x20] sm:$0xff] %vm1421, %v1403
  %1427 = vst.msk [vmem:[%s4 + $0x28] sm:$0xff] %vm1421, %v1408
  %1428 = vst.msk [vmem:[%s4 + $0x30] sm:$0xff] %vm1421, %v1413
  %1429 = vst.msk [vmem:[%s4 + $0x38] sm:$0xff] %vm1421, %v1418
  // Predicated region
  $region18: #{cvnp_forward.1} parent=0 // pred_check
    _
  $region19: #{cvnp_forward.1} parent=0 // pred_check_branch
    %1431 = sbr.rel (0) target = $region21
  $region20: #{cvnp_forward.1} parent=0 // pred_region
    _
  $region21: #{cvnp_forward.1} parent=0 // pred_fallthru
    _
  // Predicated region
  $region22: #{cvnp_forward.1} parent=0 // pred_check
    _
  $region23: #{cvnp_forward.1} parent=0 // pred_check_branch
    %1433 = sbr.rel (0) target = $region25
  $region24: #{cvnp_forward.1} parent=0 // pred_region
    _
  $region25: #{cvnp_forward.1} parent=0 // pred_fallthru
    _

</llo_original>
